<compile_context>
chip_gen: v7x
topology: tpu7x:2x2x1
jax: 0.10.0
libtpu: 0.0.40
codegen_flags: <defaults>
</compile_context>

<pallas_src>
import functools

import jax
import jax.numpy as jnp
from jax.experimental import pallas as pl
from jax.experimental.pallas import tpu as pltpu


# ----------------------------------------------------------------------------
# Fused whole-stack kernel.
# ----------------------------------------------------------------------------

def _tcn_stack_kernel(*refs, layer_cfg, K, Cp, T_t, n_t_tiles, n_weight_refs):
    """Runs every TemporalBlock for one (batch, time-tile) grid step.

    refs = [x_ref, <per-layer weight refs...>, o_ref,
            stack_ref, cx_ref, ch_ref]
      x_ref   : (1, T_t, Cp)  input activations (compute dtype)
      weights : per layer: w1 (K*Cp, Cp), b1 (1, Cp), w2 (K*Cp, Cp), b2 (1, Cp)
                [, wd (Cp, Cp), bd (1, Cp) if the block has a 1x1 downsample]
      o_ref   : (1, T_t, Cp)  output activations
      stack_ref : (T_t, K*Cp) stacked conv lhs (taps side by side on lanes)
      cx_ref / ch_ref : (L, pad_max, Cp) carried causal left context of the
                conv1 / conv2 inputs of every layer (only used across tiles).
    """
    x_ref = refs[0]
    w_refs = refs[1:1 + n_weight_refs]
    o_ref = refs[1 + n_weight_refs]
    stack_ref, cx_ref, ch_ref = refs[2 + n_weight_refs:]

    t = pl.program_id(1)
    cdt = o_ref.dtype
    pad_max = cx_ref.shape[1]

    # Causal left context starts as zeros (== the left zero padding of the
    # PyTorch Conv1d + Chomp).  Reset at the first time tile of every batch
    # element; with a single time tile this is the only zeroing ever done.
    @pl.when(t == 0)
    def _():
        cx_ref[...] = jnp.zeros_like(cx_ref)
        ch_ref[...] = jnp.zeros_like(ch_ref)

    def fill_taps(src, ctx_ref, li, d):
        # Tap k of `src`, shifted right in time by (K-1-k)*d, goes into lane
        # block [k*Cp, (k+1)*Cp) of the stacked scratch.  Rows that fall
        # before the current tile come from the carried context.
        for k in range(K):
            s = (K - 1 - k) * d
            lo, hi = k * Cp, (k + 1) * Cp
            n_ctx = min(s, T_t)
            n_dat = T_t - n_ctx
            if n_ctx > 0:
                stack_ref[0:n_ctx, lo:hi] = (
                    ctx_ref[li, pad_max - s:pad_max - s + n_ctx, :])
            if n_dat > 0:
                stack_ref[n_ctx:T_t, lo:hi] = src[0:n_dat, :]

    act = x_ref[0]                                     # (T_t, Cp)
    wi = 0
    for li, (d, has_down) in enumerate(layer_cfg):
        pad = (K - 1) * d
        w1, b1, w2, b2 = w_refs[wi:wi + 4]
        wi += 4
        if has_down:
            wd, bd = w_refs[wi:wi + 2]
            wi += 2

        # conv1 -> chomp -> ReLU -> dropout(identity); one MXU matmul.
        fill_taps(act, cx_ref, li, d)
        if n_t_tiles > 1 and pad > 0:      # save left context for next tile
            cx_ref[li, pad_max - pad:pad_max, :] = act[T_t - pad:T_t, :]
        h = jnp.maximum(
            jnp.dot(stack_ref[...], w1[...],
                    preferred_element_type=jnp.float32) + b1[...], 0.0)
        h = h.astype(cdt)

        # conv2 -> chomp -> ReLU -> dropout(identity).
        fill_taps(h, ch_ref, li, d)
        if n_t_tiles > 1 and pad > 0:
            ch_ref[li, pad_max - pad:pad_max, :] = h[T_t - pad:T_t, :]
        out = jnp.maximum(
            jnp.dot(stack_ref[...], w2[...],
                    preferred_element_type=jnp.float32) + b2[...], 0.0)

        # residual (identity or fused 1x1 downsample) + final ReLU.
        if has_down:
            res = jnp.dot(act, wd[...],
                          preferred_element_type=jnp.float32) + bd[...]
        else:
            res = act.astype(jnp.float32)
        act = jnp.maximum(out + res, 0.0).astype(cdt)

    o_ref[0] = act                                     # lane-dense store


# ----------------------------------------------------------------------------
# pallas_call wrapper: one call for the whole block stack.
# ----------------------------------------------------------------------------

def _replicated_spec(shape):
    nd = len(shape)
    return pl.BlockSpec(shape, lambda b, t, _nd=nd: (0,) * _nd)


def tcn_stack_forward(x, prepared, *, time_tile=None):
    """x: (B, T, Cp) lane-padded activations in the compute dtype.
    Runs every TemporalBlock inside one pallas_call; returns (B, T, Cp)."""
    B, T, Cp = x.shape
    K = prepared["kernel_size"]
    layers = prepared["layers"]
    cdt = x.dtype
    L = len(layers)

    T_t = T if time_tile is None else int(time_tile)
    assert T % T_t == 0, "time_tile must divide T"
    n_t = T // T_t
    dil_max = max(lyr["dilation"] for lyr in layers)
    pad_max = max(1, (K - 1) * dil_max)
    if n_t > 1:
        assert T_t % 8 == 0 and T_t >= pad_max, (
            "time tile must be sublane aligned and >= the largest (K-1)*d")

    in_specs = [pl.BlockSpec((1, T_t, Cp), lambda b, t: (b, t, 0))]
    args = [x]
    layer_cfg = []
    n_flops = 0
    for lyr in layers:
        for name in ("w1", "b1", "w2", "b2"):
            in_specs.append(_replicated_spec(lyr[name].shape))
            args.append(lyr[name])
        has_down = "wd" in lyr
        if has_down:
            for name in ("wd", "bd"):
                in_specs.append(_replicated_spec(lyr[name].shape))
                args.append(lyr[name])
        layer_cfg.append((int(lyr["dilation"]), has_down))
        n_flops += 2 * B * T * (K * Cp) * Cp * 2           # conv1 + conv2
        if has_down:
            n_flops += 2 * B * T * Cp * Cp                  # 1x1 downsample
    n_weight_refs = len(args) - 1

    # Generation-aware-ish scoped-VMEM request: actual footprint (weights are
    # double-buffered by default, activations double-buffered, scratches,
    # f32 temporaries) with headroom, kept <= 64 MiB for v7x.
    itemsize = jnp.dtype(cdt).itemsize
    w_bytes = sum(int(a.size) * a.dtype.itemsize for a in args[1:])
    act_blk = T_t * Cp * itemsize
    scratch_bytes = (T_t * K * Cp + 2 * L * pad_max * Cp) * itemsize
    f32_tmp = 4 * T_t * Cp * 4
    est = 2 * w_bytes + 4 * act_blk + scratch_bytes + f32_tmp
    vmem_limit = int(min(64 * 1024 * 1024, max(32 * 1024 * 1024, 2 * est)))

    bytes_accessed = int(2 * B * T * Cp * itemsize + w_bytes)

    kern = functools.partial(
        _tcn_stack_kernel, layer_cfg=tuple(layer_cfg), K=K, Cp=Cp, T_t=T_t,
        n_t_tiles=n_t, n_weight_refs=n_weight_refs)

    return pl.pallas_call(
        kern,
        out_shape=jax.ShapeDtypeStruct((B, T, Cp), cdt),
        grid=(B, n_t),
        in_specs=in_specs,
        out_specs=pl.BlockSpec((1, T_t, Cp), lambda b, t: (b, t, 0)),
        scratch_shapes=[
            pltpu.VMEM((T_t, K * Cp), cdt),       # stacked conv lhs
            pltpu.VMEM((L, pad_max, Cp), cdt),    # per-layer conv1 left ctx
            pltpu.VMEM((L, pad_max, Cp), cdt),    # per-layer conv2 left ctx
        ],
        compiler_params=pltpu.CompilerParams(
            dimension_semantics=("parallel", "arbitrary"),
            vmem_limit_bytes=vmem_limit),
        cost_estimate=pl.CostEstimate(
            flops=int(n_flops), transcendentals=0,
            bytes_accessed=bytes_accessed),
    )(*args)


# ----------------------------------------------------------------------------
# Parameter construction + one-time weight prep (weight_norm, stack, lane-pad).
# ----------------------------------------------------------------------------

def _weight_norm(v, g):
    # PyTorch weight_norm(dim=0): w[o] = g[o] * v[o] / ||v[o]||_2 over (Cin, K)
    norm = jnp.sqrt(jnp.sum(v * v, axis=(1, 2), keepdims=True))
    return g[:, None, None] * v / norm


def _round_up(n, m):
    return -(-n // m) * m


def _pad_to(a, shape):
    return jnp.pad(a, [(0, s - d) for d, s in zip(a.shape, shape)])


def make_tcn_params(key, num_inputs, num_channels, kernel_size):
    """PyTorch-layout parameters (v/g for weight_norm, Conv1d (Cout,Cin,K))."""
    params = []
    for i, out_c in enumerate(num_channels):
        in_c = num_inputs if i == 0 else num_channels[i - 1]
        keys = jax.random.split(jax.random.fold_in(key, i), 6)
        v1 = 0.01 * jax.random.normal(keys[0], (out_c, in_c, kernel_size),
                                      jnp.float32)
        g1 = jnp.sqrt(jnp.sum(v1 * v1, axis=(1, 2)))
        b1 = 0.01 * jax.random.normal(keys[1], (out_c,), jnp.float32)
        v2 = 0.01 * jax.random.normal(keys[2], (out_c, out_c, kernel_size),
                                      jnp.float32)
        g2 = jnp.sqrt(jnp.sum(v2 * v2, axis=(1, 2)))
        b2 = 0.01 * jax.random.normal(keys[3], (out_c,), jnp.float32)
        blk = {"v1": v1, "g1": g1, "b1": b1, "v2": v2, "g2": g2, "b2": b2,
               "dilation": 2 ** i, "kernel_size": kernel_size}
        if in_c != out_c:
            blk["wd"] = 0.01 * jax.random.normal(keys[4], (out_c, in_c, 1),
                                                 jnp.float32)
            blk["bd"] = 0.01 * jax.random.normal(keys[5], (out_c,), jnp.float32)
        params.append(blk)
    return params


def prepare_tcn_params(params, num_inputs, compute_dtype=jnp.float32,
                       lane=128):
    """Resolve weight_norm, stack conv taps k-major and zero-pad EVERY channel
    width to one lane-aligned width Cp (multiple of 128).  Done once, outside
    the hot path.  Conv weights (Cout,Cin,K) -> (K,Cp,Cp) -> (K*Cp, Cp).
    Biases stay in f32; padded channels are exactly zero end to end."""
    K = params[0]["kernel_size"]
    assert all(blk["kernel_size"] == K for blk in params)
    widths = [num_inputs] + [blk["v1"].shape[0] for blk in params]
    Cp = _round_up(max(widths), lane)
    layers = []
    for blk in params:
        w1 = jnp.transpose(_weight_norm(blk["v1"], blk["g1"]), (2, 1, 0))
        w1 = _pad_to(w1, (K, Cp, Cp)).reshape(K * Cp, Cp).astype(compute_dtype)
        w2 = jnp.transpose(_weight_norm(blk["v2"], blk["g2"]), (2, 1, 0))
        w2 = _pad_to(w2, (K, Cp, Cp)).reshape(K * Cp, Cp).astype(compute_dtype)
        lyr = {"w1": w1,
               "b1": _pad_to(blk["b1"], (Cp,))[None, :].astype(jnp.float32),
               "w2": w2,
               "b2": _pad_to(blk["b2"], (Cp,))[None, :].astype(jnp.float32),
               "dilation": blk["dilation"]}
        if "wd" in blk:
            wd = jnp.transpose(blk["wd"][:, :, 0], (1, 0))     # (Cin, Cout)
            lyr["wd"] = _pad_to(wd, (Cp, Cp)).astype(compute_dtype)
            lyr["bd"] = _pad_to(blk["bd"], (Cp,))[None, :].astype(jnp.float32)
        layers.append(lyr)
    return {"layers": layers, "kernel_size": K, "c_pad": Cp,
            "c_out": params[-1]["v1"].shape[0]}


def temporal_conv_net(x_bct, prepared, compute_dtype=jnp.float32,
                      time_tile=None):
    """x_bct: (B, C_in, T) float32 (PyTorch layout).  Returns (B, C_out, T)
    float32.  Inference-mode forward (Dropout(p=0.2) is identity)."""
    Cp = prepared["c_pad"]
    x = jnp.transpose(x_bct, (0, 2, 1))                      # (B, T, C_in)
    c_in = x.shape[-1]
    if c_in < Cp:
        x = jnp.pad(x, ((0, 0), (0, 0), (0, Cp - c_in)))     # lane-pad once
    y = tcn_stack_forward(x.astype(compute_dtype), prepared,
                          time_tile=time_tile)
    y = y[:, :, :prepared["c_out"]].astype(jnp.float32)
    return jnp.transpose(y, (0, 2, 1))                       # back to (B,C,T)


# ----------------------------------------------------------------------------
# Pure-JAX f32 reference.
# ----------------------------------------------------------------------------

def _ref_tcn(x_bct, params):
    x = jnp.transpose(x_bct, (0, 2, 1))

    def conv(x_btc, w_kio, b, d):
        K = w_kio.shape[0]
        T = x_btc.shape[1]
        pad = (K - 1) * d
        xp = jnp.pad(x_btc, ((0, 0), (pad, 0), (0, 0)))
        out = jnp.zeros(x_btc.shape[:2] + (w_kio.shape[-1],), jnp.float32)
        for k in range(K):
            out = out + jnp.einsum("btc,co->bto",
                                   xp[:, k * d:k * d + T, :], w_kio[k])
        return out + b

    for blk in params:
        d = blk["dilation"]
        w1 = jnp.transpose(_weight_norm(blk["v1"], blk["g1"]), (2, 1, 0))
        w2 = jnp.transpose(_weight_norm(blk["v2"], blk["g2"]), (2, 1, 0))
        h = jax.nn.relu(conv(x, w1, blk["b1"][None, :], d))
        out = jax.nn.relu(conv(h, w2, blk["b2"][None, :], d))
        if "wd" in blk:
            wd = jnp.transpose(blk["wd"][:, :, 0], (1, 0))
            res = jnp.einsum("btc,co->bto", x, wd) + blk["bd"][None, None, :]
        else:
            res = x
        x = jax.nn.relu(out + res)
    return jnp.transpose(x, (0, 2, 1))


# ----------------------------------------------------------------------------

if __name__ == "__main__":
    key = jax.random.PRNGKey(0)
    B, C_in, T = 2, 4, 16
    num_channels = (8, 8)          # two TemporalBlocks, dilations 1 and 2
    kernel_size = 2

    x = jax.random.normal(jax.random.fold_in(key, 123), (B, C_in, T),
                          jnp.float32)
    params = make_tcn_params(jax.random.fold_in(key, 7), C_in, num_channels,
                             kernel_size)
    y_ref = _ref_tcn(x, params)

    # f32, whole stack fused in one kernel, single time tile.
    # (Tolerance allows for the MXU's default-precision f32 matmul path.)
    prep_f32 = prepare_tcn_params(params, C_in, jnp.float32)
    y_f32 = jax.block_until_ready(temporal_conv_net(x, prep_f32, jnp.float32))
    assert y_f32.shape == (B, num_channels[-1], T), y_f32.shape
    assert jnp.allclose(y_f32, y_ref, atol=1e-3, rtol=1e-3), (
        float(jnp.max(jnp.abs(y_f32 - y_ref))))

    # f32, time-tiled path (exercises the carried causal left context).
    y_tt = jax.block_until_ready(
        temporal_conv_net(x, prep_f32, jnp.float32, time_tile=8))
    assert jnp.allclose(y_tt, y_ref, atol=1e-3, rtol=1e-3), (
        float(jnp.max(jnp.abs(y_tt - y_ref))))

    # bf16 activations/weights with f32 MXU accumulation.
    prep_bf16 = prepare_tcn_params(params, C_in, jnp.bfloat16)
    y_bf16 = jax.block_until_ready(temporal_conv_net(x, prep_bf16,
                                                     jnp.bfloat16))
    assert y_bf16.shape == (B, num_channels[-1], T), y_bf16.shape
    assert jnp.allclose(y_bf16, y_ref, atol=2e-2, rtol=2e-2), (
        float(jnp.max(jnp.abs(y_bf16 - y_ref))))

    print("KERNEL_OK")
</pallas_src>

<mosaic_0001>
module attributes {stable_mosaic.version = 11 : i64} {
  func.func @_tcn_stack_kernel(%arg0: i32, %arg1: i32, %arg2: memref<1x16x128xf32, #tpu.memory_space<vmem>>, %arg3: memref<256x128xf32, #tpu.memory_space<vmem>>, %arg4: memref<1x128xf32, #tpu.memory_space<vmem>>, %arg5: memref<256x128xf32, #tpu.memory_space<vmem>>, %arg6: memref<1x128xf32, #tpu.memory_space<vmem>>, %arg7: memref<128x128xf32, #tpu.memory_space<vmem>>, %arg8: memref<1x128xf32, #tpu.memory_space<vmem>>, %arg9: memref<256x128xf32, #tpu.memory_space<vmem>>, %arg10: memref<1x128xf32, #tpu.memory_space<vmem>>, %arg11: memref<256x128xf32, #tpu.memory_space<vmem>>, %arg12: memref<1x128xf32, #tpu.memory_space<vmem>>, %arg13: memref<1x16x128xf32, #tpu.memory_space<vmem>>, %arg14: memref<16x256xf32, #tpu.memory_space<vmem>>, %arg15: memref<2x2x128xf32, #tpu.memory_space<vmem>>, %arg16: memref<2x2x128xf32, #tpu.memory_space<vmem>>) attributes {dimension_semantics = [#tpu.dimension_semantics<parallel>, #tpu.dimension_semantics<arbitrary>], iteration_bounds = array<i64: 2, 1>, scalar_prefetch = 0 : i64, scratch_operands = 3 : i64, tpu.core_type = #tpu.core_type<tc>, window_params = [{transform_indices = @transform_0, window_bounds = array<i64: 1, 16, 128>}, {pipeline_mode = #tpu.pipeline_mode<synchronous>, transform_indices = @transform_1, window_bounds = array<i64: 256, 128>}, {pipeline_mode = #tpu.pipeline_mode<synchronous>, transform_indices = @transform_2, window_bounds = array<i64: 1, 128>}, {pipeline_mode = #tpu.pipeline_mode<synchronous>, transform_indices = @transform_3, window_bounds = array<i64: 256, 128>}, {pipeline_mode = #tpu.pipeline_mode<synchronous>, transform_indices = @transform_4, window_bounds = array<i64: 1, 128>}, {pipeline_mode = #tpu.pipeline_mode<synchronous>, transform_indices = @transform_5, window_bounds = array<i64: 128, 128>}, {pipeline_mode = #tpu.pipeline_mode<synchronous>, transform_indices = @transform_6, window_bounds = array<i64: 1, 128>}, {pipeline_mode = #tpu.pipeline_mode<synchronous>, transform_indices = @transform_7, window_bounds = array<i64: 256, 128>}, {pipeline_mode = #tpu.pipeline_mode<synchronous>, transform_indices = @transform_8, window_bounds = array<i64: 1, 128>}, {pipeline_mode = #tpu.pipeline_mode<synchronous>, transform_indices = @transform_9, window_bounds = array<i64: 256, 128>}, {pipeline_mode = #tpu.pipeline_mode<synchronous>, transform_indices = @transform_10, window_bounds = array<i64: 1, 128>}, {transform_indices = @transform_11, window_bounds = array<i64: 1, 16, 128>}]} {
    %c0_i32 = arith.constant 0 : i32
    %0 = arith.cmpi eq, %arg1, %c0_i32 : i32
    %1 = arith.extui %0 : i1 to i32
    %c0_i32_0 = arith.constant 0 : i32
    %2 = arith.cmpi ne, %1, %c0_i32_0 : i32
    scf.if %2 {
      %cst_77 = arith.constant 0.000000e+00 : f32
      %75 = vector.broadcast %cst_77 : f32 to vector<2x2x128xf32>
      %c0_78 = arith.constant 0 : index
      %c0_79 = arith.constant 0 : index
      %c0_80 = arith.constant 0 : index
      %76 = vector.load %arg15[%c0_78, %c0_79, %c0_80] : memref<2x2x128xf32, #tpu.memory_space<vmem>>, vector<2x2x128xf32>
      tpu.vector_store %arg15[%c0_78, %c0_79, %c0_80], %75 {strides = array<i32>} : memref<2x2x128xf32, #tpu.memory_space<vmem>>, vector<2x2x128xf32>,
      %cst_81 = arith.constant 0.000000e+00 : f32
      %77 = vector.broadcast %cst_81 : f32 to vector<2x2x128xf32>
      %c0_82 = arith.constant 0 : index
      %c0_83 = arith.constant 0 : index
      %c0_84 = arith.constant 0 : index
      %78 = vector.load %arg16[%c0_82, %c0_83, %c0_84] : memref<2x2x128xf32, #tpu.memory_space<vmem>>, vector<2x2x128xf32>
      tpu.vector_store %arg16[%c0_82, %c0_83, %c0_84], %77 {strides = array<i32>} : memref<2x2x128xf32, #tpu.memory_space<vmem>>, vector<2x2x128xf32>,
    } else {
    }
    %c0 = arith.constant 0 : index
    %c0_1 = arith.constant 0 : index
    %c0_2 = arith.constant 0 : index
    %3 = vector.load %arg2[%c0, %c0_1, %c0_2] : memref<1x16x128xf32, #tpu.memory_space<vmem>>, vector<1x16x128xf32>
    %4 = vector.shape_cast %3 : vector<1x16x128xf32> to vector<16x128xf32>
    %c0_3 = arith.constant 0 : index
    %c1 = arith.constant 1 : index
    %c0_4 = arith.constant 0 : index
    %5 = vector.load %arg15[%c0_3, %c1, %c0_4] : memref<2x2x128xf32, #tpu.memory_space<vmem>>, vector<1x1x128xf32>
    %6 = vector.shape_cast %5 : vector<1x1x128xf32> to vector<1x128xf32>
    %c0_5 = arith.constant 0 : index
    %c0_6 = arith.constant 0 : index
    %7 = vector.load %arg14[%c0_5, %c0_6] : memref<16x256xf32, #tpu.memory_space<vmem>>, vector<1x128xf32>
    tpu.vector_store %arg14[%c0_5, %c0_6], %6 {strides = array<i32>} : memref<16x256xf32, #tpu.memory_space<vmem>>, vector<1x128xf32>,
    %8 = vector.extract_strided_slice %4 {offsets = [0, 0], sizes = [15, 128], strides = [1, 1]} : vector<16x128xf32> to vector<15x128xf32>
    %c1_7 = arith.constant 1 : index
    %c0_8 = arith.constant 0 : index
    %9 = vector.load %arg14[%c1_7, %c0_8] : memref<16x256xf32, #tpu.memory_space<vmem>>, vector<15x128xf32>
    tpu.vector_store %arg14[%c1_7, %c0_8], %8 {strides = array<i32>} : memref<16x256xf32, #tpu.memory_space<vmem>>, vector<15x128xf32>,
    %c0_9 = arith.constant 0 : index
    %c128 = arith.constant 128 : index
    %10 = vector.load %arg14[%c0_9, %c128] : memref<16x256xf32, #tpu.memory_space<vmem>>, vector<16x128xf32>
    tpu.vector_store %arg14[%c0_9, %c128], %4 {strides = array<i32>} : memref<16x256xf32, #tpu.memory_space<vmem>>, vector<16x128xf32>,
    %c0_10 = arith.constant 0 : index
    %c0_11 = arith.constant 0 : index
    %11 = vector.load %arg14[%c0_10, %c0_11] : memref<16x256xf32, #tpu.memory_space<vmem>>, vector<16x256xf32>
    %c0_12 = arith.constant 0 : index
    %c0_13 = arith.constant 0 : index
    %12 = vector.load %arg3[%c0_12, %c0_13] : memref<256x128xf32, #tpu.memory_space<vmem>>, vector<256x128xf32>
    %cst = arith.constant dense<0.000000e+00> : vector<16x128xf32>
    %13 = tpu.matmul %11, %12, %cst {dimension_numbers = #tpu.dot_dimension_numbers<[1], [0], [0], [1], [0, 0, 1, 1], [], []>} : vector<16x256xf32>, vector<256x128xf32>, vector<16x128xf32> -> vector<16x128xf32>
    %c0_14 = arith.constant 0 : index
    %c0_15 = arith.constant 0 : index
    %14 = vector.load %arg4[%c0_14, %c0_15] : memref<1x128xf32, #tpu.memory_space<vmem>>, vector<1x128xf32>
    %15 = vector.broadcast %14 : vector<1x128xf32> to vector<16x128xf32>
    %16 = arith.addf %13, %15 : vector<16x128xf32>
    %cst_16 = arith.constant 0.000000e+00 : f32
    %17 = vector.broadcast %cst_16 : f32 to vector<16x128xf32>
    %18 = arith.maximumf %16, %17 : vector<16x128xf32>
    %c0_17 = arith.constant 0 : index
    %c1_18 = arith.constant 1 : index
    %c0_19 = arith.constant 0 : index
    %19 = vector.load %arg16[%c0_17, %c1_18, %c0_19] : memref<2x2x128xf32, #tpu.memory_space<vmem>>, vector<1x1x128xf32>
    %20 = vector.shape_cast %19 : vector<1x1x128xf32> to vector<1x128xf32>
    %c0_20 = arith.constant 0 : index
    %c0_21 = arith.constant 0 : index
    %21 = vector.load %arg14[%c0_20, %c0_21] : memref<16x256xf32, #tpu.memory_space<vmem>>, vector<1x128xf32>
    tpu.vector_store %arg14[%c0_20, %c0_21], %20 {strides = array<i32>} : memref<16x256xf32, #tpu.memory_space<vmem>>, vector<1x128xf32>,
    %22 = vector.extract_strided_slice %18 {offsets = [0, 0], sizes = [15, 128], strides = [1, 1]} : vector<16x128xf32> to vector<15x128xf32>
    %c1_22 = arith.constant 1 : index
    %c0_23 = arith.constant 0 : index
    %23 = vector.load %arg14[%c1_22, %c0_23] : memref<16x256xf32, #tpu.memory_space<vmem>>, vector<15x128xf32>
    tpu.vector_store %arg14[%c1_22, %c0_23], %22 {strides = array<i32>} : memref<16x256xf32, #tpu.memory_space<vmem>>, vector<15x128xf32>,
    %c0_24 = arith.constant 0 : index
    %c128_25 = arith.constant 128 : index
    %24 = vector.load %arg14[%c0_24, %c128_25] : memref<16x256xf32, #tpu.memory_space<vmem>>, vector<16x128xf32>
    tpu.vector_store %arg14[%c0_24, %c128_25], %18 {strides = array<i32>} : memref<16x256xf32, #tpu.memory_space<vmem>>, vector<16x128xf32>,
    %c0_26 = arith.constant 0 : index
    %c0_27 = arith.constant 0 : index
    %25 = vector.load %arg14[%c0_26, %c0_27] : memref<16x256xf32, #tpu.memory_space<vmem>>, vector<16x256xf32>
    %c0_28 = arith.constant 0 : index
    %c0_29 = arith.constant 0 : index
    %26 = vector.load %arg5[%c0_28, %c0_29] : memref<256x128xf32, #tpu.memory_space<vmem>>, vector<256x128xf32>
    %cst_30 = arith.constant dense<0.000000e+00> : vector<16x128xf32>
    %27 = tpu.matmul %25, %26, %cst_30 {dimension_numbers = #tpu.dot_dimension_numbers<[1], [0], [0], [1], [0, 0, 1, 1], [], []>} : vector<16x256xf32>, vector<256x128xf32>, vector<16x128xf32> -> vector<16x128xf32>
    %c0_31 = arith.constant 0 : index
    %c0_32 = arith.constant 0 : index
    %28 = vector.load %arg6[%c0_31, %c0_32] : memref<1x128xf32, #tpu.memory_space<vmem>>, vector<1x128xf32>
    %29 = vector.broadcast %28 : vector<1x128xf32> to vector<16x128xf32>
    %30 = arith.addf %27, %29 : vector<16x128xf32>
    %cst_33 = arith.constant 0.000000e+00 : f32
    %31 = vector.broadcast %cst_33 : f32 to vector<16x128xf32>
    %32 = arith.maximumf %30, %31 : vector<16x128xf32>
    %c0_34 = arith.constant 0 : index
    %c0_35 = arith.constant 0 : index
    %33 = vector.load %arg7[%c0_34, %c0_35] : memref<128x128xf32, #tpu.memory_space<vmem>>, vector<128x128xf32>
    %cst_36 = arith.constant dense<0.000000e+00> : vector<16x128xf32>
    %34 = tpu.matmul %4, %33, %cst_36 {dimension_numbers = #tpu.dot_dimension_numbers<[1], [0], [0], [1], [0, 0, 1, 1], [], []>} : vector<16x128xf32>, vector<128x128xf32>, vector<16x128xf32> -> vector<16x128xf32>
    %c0_37 = arith.constant 0 : index
    %c0_38 = arith.constant 0 : index
    %35 = vector.load %arg8[%c0_37, %c0_38] : memref<1x128xf32, #tpu.memory_space<vmem>>, vector<1x128xf32>
    %36 = vector.broadcast %35 : vector<1x128xf32> to vector<16x128xf32>
    %37 = arith.addf %34, %36 : vector<16x128xf32>
    %38 = arith.addf %32, %37 : vector<16x128xf32>
    %cst_39 = arith.constant 0.000000e+00 : f32
    %39 = vector.broadcast %cst_39 : f32 to vector<16x128xf32>
    %40 = arith.maximumf %38, %39 : vector<16x128xf32>
    %c1_40 = arith.constant 1 : index
    %c0_41 = arith.constant 0 : index
    %c0_42 = arith.constant 0 : index
    %41 = vector.load %arg15[%c1_40, %c0_41, %c0_42] : memref<2x2x128xf32, #tpu.memory_space<vmem>>, vector<1x2x128xf32>
    %42 = vector.shape_cast %41 : vector<1x2x128xf32> to vector<2x128xf32>
    %c0_43 = arith.constant 0 : index
    %c0_44 = arith.constant 0 : index
    %43 = vector.load %arg14[%c0_43, %c0_44] : memref<16x256xf32, #tpu.memory_space<vmem>>, vector<2x128xf32>
    tpu.vector_store %arg14[%c0_43, %c0_44], %42 {strides = array<i32>} : memref<16x256xf32, #tpu.memory_space<vmem>>, vector<2x128xf32>,
    %44 = vector.extract_strided_slice %40 {offsets = [0, 0], sizes = [14, 128], strides = [1, 1]} : vector<16x128xf32> to vector<14x128xf32>
    %c2 = arith.constant 2 : index
    %c0_45 = arith.constant 0 : index
    %45 = vector.load %arg14[%c2, %c0_45] : memref<16x256xf32, #tpu.memory_space<vmem>>, vector<14x128xf32>
    tpu.vector_store %arg14[%c2, %c0_45], %44 {strides = array<i32>} : memref<16x256xf32, #tpu.memory_space<vmem>>, vector<14x128xf32>,
    %c0_46 = arith.constant 0 : index
    %c128_47 = arith.constant 128 : index
    %46 = vector.load %arg14[%c0_46, %c128_47] : memref<16x256xf32, #tpu.memory_space<vmem>>, vector<16x128xf32>
    tpu.vector_store %arg14[%c0_46, %c128_47], %40 {strides = array<i32>} : memref<16x256xf32, #tpu.memory_space<vmem>>, vector<16x128xf32>,
    %c0_48 = arith.constant 0 : index
    %c0_49 = arith.constant 0 : index
    %47 = vector.load %arg14[%c0_48, %c0_49] : memref<16x256xf32, #tpu.memory_space<vmem>>, vector<16x256xf32>
    %c0_50 = arith.constant 0 : index
    %c0_51 = arith.constant 0 : index
    %48 = vector.load %arg9[%c0_50, %c0_51] : memref<256x128xf32, #tpu.memory_space<vmem>>, vector<256x128xf32>
    %cst_52 = arith.constant dense<0.000000e+00> : vector<16x128xf32>
    %49 = tpu.matmul %47, %48, %cst_52 {dimension_numbers = #tpu.dot_dimension_numbers<[1], [0], [0], [1], [0, 0, 1, 1], [], []>} : vector<16x256xf32>, vector<256x128xf32>, vector<16x128xf32> -> vector<16x128xf32>
    %c0_53 = arith.constant 0 : index
    %c0_54 = arith.constant 0 : index
    %50 = vector.load %arg10[%c0_53, %c0_54] : memref<1x128xf32, #tpu.memory_space<vmem>>, vector<1x128xf32>
    %51 = vector.broadcast %50 : vector<1x128xf32> to vector<16x128xf32>
    %52 = arith.addf %49, %51 : vector<16x128xf32>
    %cst_55 = arith.constant 0.000000e+00 : f32
    %53 = vector.broadcast %cst_55 : f32 to vector<16x128xf32>
    %54 = arith.maximumf %52, %53 : vector<16x128xf32>
    %c1_56 = arith.constant 1 : index
    %c0_57 = arith.constant 0 : index
    %c0_58 = arith.constant 0 : index
    %55 = vector.load %arg16[%c1_56, %c0_57, %c0_58] : memref<2x2x128xf32, #tpu.memory_space<vmem>>, vector<1x2x128xf32>
    %56 = vector.shape_cast %55 : vector<1x2x128xf32> to vector<2x128xf32>
    %c0_59 = arith.constant 0 : index
    %c0_60 = arith.constant 0 : index
    %57 = vector.load %arg14[%c0_59, %c0_60] : memref<16x256xf32, #tpu.memory_space<vmem>>, vector<2x128xf32>
    tpu.vector_store %arg14[%c0_59, %c0_60], %56 {strides = array<i32>} : memref<16x256xf32, #tpu.memory_space<vmem>>, vector<2x128xf32>,
    %58 = vector.extract_strided_slice %54 {offsets = [0, 0], sizes = [14, 128], strides = [1, 1]} : vector<16x128xf32> to vector<14x128xf32>
    %c2_61 = arith.constant 2 : index
    %c0_62 = arith.constant 0 : index
    %59 = vector.load %arg14[%c2_61, %c0_62] : memref<16x256xf32, #tpu.memory_space<vmem>>, vector<14x128xf32>
    tpu.vector_store %arg14[%c2_61, %c0_62], %58 {strides = array<i32>} : memref<16x256xf32, #tpu.memory_space<vmem>>, vector<14x128xf32>,
    %c0_63 = arith.constant 0 : index
    %c128_64 = arith.constant 128 : index
    %60 = vector.load %arg14[%c0_63, %c128_64] : memref<16x256xf32, #tpu.memory_space<vmem>>, vector<16x128xf32>
    tpu.vector_store %arg14[%c0_63, %c128_64], %54 {strides = array<i32>} : memref<16x256xf32, #tpu.memory_space<vmem>>, vector<16x128xf32>,
    %c0_65 = arith.constant 0 : index
    %c0_66 = arith.constant 0 : index
    %61 = vector.load %arg14[%c0_65, %c0_66] : memref<16x256xf32, #tpu.memory_space<vmem>>, vector<16x256xf32>
    %c0_67 = arith.constant 0 : index
    %c0_68 = arith.constant 0 : index
    %62 = vector.load %arg11[%c0_67, %c0_68] : memref<256x128xf32, #tpu.memory_space<vmem>>, vector<256x128xf32>
    %cst_69 = arith.constant dense<0.000000e+00> : vector<16x128xf32>
    %63 = tpu.matmul %61, %62, %cst_69 {dimension_numbers = #tpu.dot_dimension_numbers<[1], [0], [0], [1], [0, 0, 1, 1], [], []>} : vector<16x256xf32>, vector<256x128xf32>, vector<16x128xf32> -> vector<16x128xf32>
    %c0_70 = arith.constant 0 : index
    %c0_71 = arith.constant 0 : index
    %64 = vector.load %arg12[%c0_70, %c0_71] : memref<1x128xf32, #tpu.memory_space<vmem>>, vector<1x128xf32>
    %65 = vector.broadcast %64 : vector<1x128xf32> to vector<16x128xf32>
    %66 = arith.addf %63, %65 : vector<16x128xf32>
    %cst_72 = arith.constant 0.000000e+00 : f32
    %67 = vector.broadcast %cst_72 : f32 to vector<16x128xf32>
    %68 = arith.maximumf %66, %67 : vector<16x128xf32>
    %69 = arith.addf %68, %40 : vector<16x128xf32>
    %cst_73 = arith.constant 0.000000e+00 : f32
    %70 = vector.broadcast %cst_73 : f32 to vector<16x128xf32>
    %71 = arith.maximumf %69, %70 : vector<16x128xf32>
    %c0_74 = arith.constant 0 : index
    %c0_75 = arith.constant 0 : index
    %c0_76 = arith.constant 0 : index
    %72 = vector.load %arg13[%c0_74, %c0_75, %c0_76] : memref<1x16x128xf32, #tpu.memory_space<vmem>>, vector<1x16x128xf32>
    %73 = vector.shape_cast %72 : vector<1x16x128xf32> to vector<16x128xf32>
    %74 = vector.shape_cast %71 : vector<16x128xf32> to vector<1x16x128xf32>
    tpu.vector_store %arg13[%c0_74, %c0_75, %c0_76], %74 {strides = array<i32>} : memref<1x16x128xf32, #tpu.memory_space<vmem>>, vector<1x16x128xf32>,
    return
  }
  func.func @transform_0(%arg0: i32, %arg1: i32) -> (i32, i32, i32) {
    %c0_i32 = arith.constant 0 : i32
    %c0_i32_0 = arith.constant 0 : i32
    return %arg0, %arg1, %c0_i32 : i32, i32, i32
  }
  func.func @transform_1(%arg0: i32, %arg1: i32) -> (i32, i32) {
    %c0_i32 = arith.constant 0 : i32
    %c0_i32_0 = arith.constant 0 : i32
    %c0_i32_1 = arith.constant 0 : i32
    return %c0_i32, %c0_i32_0 : i32, i32
  }
  func.func @transform_2(%arg0: i32, %arg1: i32) -> (i32, i32) {
    %c0_i32 = arith.constant 0 : i32
    %c0_i32_0 = arith.constant 0 : i32
    %c0_i32_1 = arith.constant 0 : i32
    return %c0_i32, %c0_i32_0 : i32, i32
  }
  func.func @transform_3(%arg0: i32, %arg1: i32) -> (i32, i32) {
    %c0_i32 = arith.constant 0 : i32
    %c0_i32_0 = arith.constant 0 : i32
    %c0_i32_1 = arith.constant 0 : i32
    return %c0_i32, %c0_i32_0 : i32, i32
  }
  func.func @transform_4(%arg0: i32, %arg1: i32) -> (i32, i32) {
    %c0_i32 = arith.constant 0 : i32
    %c0_i32_0 = arith.constant 0 : i32
    %c0_i32_1 = arith.constant 0 : i32
    return %c0_i32, %c0_i32_0 : i32, i32
  }
  func.func @transform_5(%arg0: i32, %arg1: i32) -> (i32, i32) {
    %c0_i32 = arith.constant 0 : i32
    %c0_i32_0 = arith.constant 0 : i32
    %c0_i32_1 = arith.constant 0 : i32
    return %c0_i32, %c0_i32_0 : i32, i32
  }
  func.func @transform_6(%arg0: i32, %arg1: i32) -> (i32, i32) {
    %c0_i32 = arith.constant 0 : i32
    %c0_i32_0 = arith.constant 0 : i32
    %c0_i32_1 = arith.constant 0 : i32
    return %c0_i32, %c0_i32_0 : i32, i32
  }
  func.func @transform_7(%arg0: i32, %arg1: i32) -> (i32, i32) {
    %c0_i32 = arith.constant 0 : i32
    %c0_i32_0 = arith.constant 0 : i32
    %c0_i32_1 = arith.constant 0 : i32
    return %c0_i32, %c0_i32_0 : i32, i32
  }
  func.func @transform_8(%arg0: i32, %arg1: i32) -> (i32, i32) {
    %c0_i32 = arith.constant 0 : i32
    %c0_i32_0 = arith.constant 0 : i32
    %c0_i32_1 = arith.constant 0 : i32
    return %c0_i32, %c0_i32_0 : i32, i32
  }
  func.func @transform_9(%arg0: i32, %arg1: i32) -> (i32, i32) {
    %c0_i32 = arith.constant 0 : i32
    %c0_i32_0 = arith.constant 0 : i32
    %c0_i32_1 = arith.constant 0 : i32
    return %c0_i32, %c0_i32_0 : i32, i32
  }
  func.func @transform_10(%arg0: i32, %arg1: i32) -> (i32, i32) {
    %c0_i32 = arith.constant 0 : i32
    %c0_i32_0 = arith.constant 0 : i32
    %c0_i32_1 = arith.constant 0 : i32
    return %c0_i32, %c0_i32_0 : i32, i32
  }
  func.func @transform_11(%arg0: i32, %arg1: i32) -> (i32, i32, i32) {
    %c0_i32 = arith.constant 0 : i32
    %c0_i32_0 = arith.constant 0 : i32
    return %arg0, %arg1, %c0_i32 : i32, i32, i32
  }
}

</mosaic_0001>

<llo_original>
// kernel: tpu_custom_call.1
$region0: #{tpu_custom_call.1}
  #allocation0 [shape = 'u32[]', space=smem, size = 0x4, offset = 0x4, fixed_abs, tag = 'smem constant byte address 0x4 - core index']
  #allocation1 [shape = 'u32[144,128]{1,0:T(1,128)}', space=vmem, size = 0x12000, scoped, tag = 'internal scratch']
  #allocation2 [shape = 'f32[16,256]{1,0:T(8,128)}', space=vmem, size = 0x4000, scoped, tag = 'scratch operand']
  #allocation3 [shape = 'f32[2,2,128]{2,1,0:T(2,128)}', space=vmem, size = 0x800, scoped, tag = 'scratch operand']
  #allocation4 [shape = 'f32[2,2,128]{2,1,0:T(2,128)}', space=vmem, size = 0x800, scoped, tag = 'scratch operand']
  %s0 = inlined_call_operand.hbm [shape: f32[2,16,128], index: 0, kind: input, shape index: {}]
  %s1 = inlined_call_operand.hbm [shape: f32[256,128], index: 1, kind: input, shape index: {}]
  %s2 = inlined_call_operand.vmem [shape: f32[1,128], index: 2, kind: input, shape index: {}]
  %s3 = inlined_call_operand.hbm [shape: f32[256,128], index: 3, kind: input, shape index: {}]
  %s4 = inlined_call_operand.vmem [shape: f32[1,128], index: 4, kind: input, shape index: {}]
  %s5 = inlined_call_operand.hbm [shape: f32[128,128], index: 5, kind: input, shape index: {}]
  %s6 = inlined_call_operand.vmem [shape: f32[1,128], index: 6, kind: input, shape index: {}]
  %s7 = inlined_call_operand.hbm [shape: f32[256,128], index: 7, kind: input, shape index: {}]
  %s8 = inlined_call_operand.vmem [shape: f32[1,128], index: 8, kind: input, shape index: {}]
  %s9 = inlined_call_operand.hbm [shape: f32[256,128], index: 9, kind: input, shape index: {}]
  %s10 = inlined_call_operand.vmem [shape: f32[1,128], index: 10, kind: input, shape index: {}]
  %s11 = inlined_call_operand.hbm [shape: f32[2,16,128], index: 11, kind: output, shape index: {}]
  %s12 = sld [smem:[#allocation0]]
  $region105: #{tpu_custom_call.1} parent=0
    _
  %s14 = ssub.s32 1, %s12
  %s15 = scalar_select 0, %s14, %s12
  $region1: #{tpu_custom_call.1} parent=0
    #allocation5 [shape = 'u8[16384]{0}', space=vmem, size = 0x4000, scoped, tag = 'input window, operand 0']
    #allocation6 [shape = 's32[2]{0}', space=sflag, size = 0x8, scoped, tag = 'scoped memory for tpu_custom_call.1']
    #allocation7 [shape = 's32[2]{0}', space=sflag, size = 0x8, scoped, tag = 'scoped memory for tpu_custom_call.1']
    #allocation8 [shape = 'u8[131072]{0}', space=vmem, size = 0x20000, scoped, tag = 'input window, operand 1, single buffered']
    #allocation9 [shape = 's32[1]{0}', space=sflag, size = 0x4, scoped, tag = 'scoped memory for tpu_custom_call.1']
    #allocation10 [shape = 'u8[131072]{0}', space=vmem, size = 0x20000, scoped, tag = 'input window, operand 3, single buffered']
    #allocation11 [shape = 'u8[65536]{0}', space=vmem, size = 0x10000, scoped, tag = 'input window, operand 5, single buffered']
    #allocation12 [shape = 's32[1]{0}', space=sflag, size = 0x4, scoped, tag = 'scoped memory for tpu_custom_call.1']
    #allocation13 [shape = 'u8[131072]{0}', space=vmem, size = 0x20000, scoped, tag = 'input window, operand 7, single buffered']
    #allocation14 [shape = 'u8[131072]{0}', space=vmem, size = 0x20000, scoped, tag = 'input window, operand 9, single buffered']
    #allocation15 [shape = 's32[1]{0}', space=sflag, size = 0x4, scoped, tag = 'scoped memory for tpu_custom_call.1']
    #allocation16 [shape = 'u8[16384]{0}', space=vmem, size = 0x4000, scoped, tag = 'output window, operand 0']
    %16 = vsyncpa [#allocation6], 0
    %s17 = scalar_lea.sflag [#allocation6], 1
    %18 = vsyncpa %s17, 0
    %19 = vsyncpa [#allocation9], 0
    %20 = vsyncpa [#allocation12], 0
    %21 = vsyncpa [#allocation15], 0
    %22 = vsyncpa [#allocation7], 0
    %s23 = scalar_lea.sflag [#allocation7], 1
    %24 = vsyncpa %s23, 0
    loop: start=0, step=1, limit=4
    $region2: #{tpu_custom_call.1} parent=1 // loop_pre_header
      _
    $region3: #{tpu_custom_call.1} parent=1 // loop_header
      %s26 = sphi 0, %s30
      %p27 = scmp.ge.s32.totalorder %s26, 4
      %s33 = sphi 0, %s45
      %s34 = sphi 0, %s41
      %s35 = sphi 0, %s33
      %s36 = sphi 0, %s34
      %s37 = sphi 0, %s35
      %s38 = sphi 0, %s36
      %s50 = sphi 0, %s52
      %s53 = sphi 0, %s50
      %s54 = sphi 0, %s53
      %s70 = sphi 0, %s54
      %s74 = sphi 0, %s74
      %s76 = sphi 0, %s74
      %s77 = sphi 0, %s76
      %s91 = sphi 0, %s77
      %s95 = sphi 0, %s95
      %s97 = sphi 0, %s95
      %s98 = sphi 0, %s97
      %s112 = sphi 0, %s98
      %s116 = sphi 0, %s116
      %s118 = sphi 0, %s116
      %s119 = sphi 0, %s118
      %s133 = sphi 0, %s119
      %s137 = sphi 0, %s137
      %s139 = sphi 0, %s137
      %s140 = sphi 0, %s139
      %s154 = sphi 0, %s140
      %s158 = sphi 0, %s158
      %s160 = sphi 0, %s158
      %s161 = sphi 0, %s160
      %s175 = sphi 0, %s161
      %s179 = sphi 0, %s179
      %s181 = sphi 0, %s179
      %s182 = sphi 0, %s181
      %s196 = sphi 0, %s182
      %s200 = sphi 0, %s200
      %s202 = sphi 0, %s200
      %s203 = sphi 0, %s202
      %s217 = sphi 0, %s203
      %s221 = sphi 0, %s221
      %s223 = sphi 0, %s221
      %s224 = sphi 0, %s223
      %s238 = sphi 0, %s224
      %s242 = sphi 0, %s242
      %s244 = sphi 0, %s242
      %s245 = sphi 0, %s244
      %s259 = sphi 0, %s245
      %s263 = sphi 0, %s263
      %s265 = sphi 0, %s263
      %s266 = sphi 0, %s265
      %s280 = sphi 0, %s266
      %s288 = sphi 0, %s290
      %s291 = sphi 0, %s288
      %s292 = sphi 0, %s291
      %s308 = sphi 0, %s292
    $region4: #{tpu_custom_call.1} parent=1 // loop_header_branch
      %29 = sbr.rel (%p27) target = $region8
    $region5: #{tpu_custom_call.1} parent=1 // loop_body
      %s31 = ssub.s32 %s26, 1
      %s32 = ssub.s32 %s26, 2
      %s39 = sadd.s32 1, %s34
      %p40 = scmp.ge.s32.totalorder %s39, 1
      %s41 = scalar_select %p40, 0, %s39
      %s42 = sadd.s32 1, %s33
      %s43 = scalar_select %p40, %s42, %s33
      %p44 = scmp.ge.s32.totalorder %s43, 2
      %s45 = scalar_select %p44, 0, %s43
      %s46 = ssub.s32 %s33, %s45
      %s47 = ssub.s32 %s34, %s41
      %s48 = sor.u32 %s46, %s47
      %p49 = scmp.eq.s32.totalorder %s48, 0
      %s51 = sadd.s32 %s50, 1
      %s52 = scalar_select %p49, %s50, %s51
      %p55 = pneg %p49
      %p56 = scmp.eq.s32.totalorder %s26, 1
      %p57 = por %p55, %p56
      %p58 = scmp.ne.s32.totalorder %s50, %s53
      %p59 = scmp.eq.s32.totalorder %s26, 0
      %p60 = por %p58, %p59
      %p61 = scmp.ne.s32.totalorder %s50, %s53
      %p62 = scmp.eq.s32.totalorder %s31, 1
      %p63 = por %p61, %p62
      %p64 = scmp.ne.s32.totalorder %s53, %s54
      %p65 = scmp.eq.s32.totalorder %s31, 0
      %p66 = por %p64, %p65
      %p67 = scmp.ne.s32.totalorder %s53, %s54
      %p68 = scmp.eq.s32.totalorder %s32, 1
      %p69 = por %p67, %p68
      %p71 = scmp.ne.s32.totalorder %s54, %s70
      %p72 = scmp.eq.s32.totalorder %s32, 0
      %p73 = por %p71, %p72
      %s75 = sadd.s32 %s74, 1
      %p78 = scmp.eq.s32.totalorder %s26, 1
      %p79 = scmp.ne.s32.totalorder %s74, %s76
      %p80 = scmp.eq.s32.totalorder %s26, 0
      %p81 = por %p79, %p80
      %p82 = scmp.ne.s32.totalorder %s74, %s76
      %p83 = scmp.eq.s32.totalorder %s31, 1
      %p84 = por %p82, %p83
      %p85 = scmp.ne.s32.totalorder %s76, %s77
      %p86 = scmp.eq.s32.totalorder %s31, 0
      %p87 = por %p85, %p86
      %p88 = scmp.ne.s32.totalorder %s76, %s77
      %p89 = scmp.eq.s32.totalorder %s32, 1
      %p90 = por %p88, %p89
      %p92 = scmp.ne.s32.totalorder %s77, %s91
      %p93 = scmp.eq.s32.totalorder %s32, 0
      %p94 = por %p92, %p93
      %s96 = sadd.s32 %s95, 1
      %p99 = scmp.eq.s32.totalorder %s26, 1
      %p100 = scmp.ne.s32.totalorder %s95, %s97
      %p101 = scmp.eq.s32.totalorder %s26, 0
      %p102 = por %p100, %p101
      %p103 = scmp.ne.s32.totalorder %s95, %s97
      %p104 = scmp.eq.s32.totalorder %s31, 1
      %p105 = por %p103, %p104
      %p106 = scmp.ne.s32.totalorder %s97, %s98
      %p107 = scmp.eq.s32.totalorder %s31, 0
      %p108 = por %p106, %p107
      %p109 = scmp.ne.s32.totalorder %s97, %s98
      %p110 = scmp.eq.s32.totalorder %s32, 1
      %p111 = por %p109, %p110
      %p113 = scmp.ne.s32.totalorder %s98, %s112
      %p114 = scmp.eq.s32.totalorder %s32, 0
      %p115 = por %p113, %p114
      %s117 = sadd.s32 %s116, 1
      %p120 = scmp.eq.s32.totalorder %s26, 1
      %p121 = scmp.ne.s32.totalorder %s116, %s118
      %p122 = scmp.eq.s32.totalorder %s26, 0
      %p123 = por %p121, %p122
      %p124 = scmp.ne.s32.totalorder %s116, %s118
      %p125 = scmp.eq.s32.totalorder %s31, 1
      %p126 = por %p124, %p125
      %p127 = scmp.ne.s32.totalorder %s118, %s119
      %p128 = scmp.eq.s32.totalorder %s31, 0
      %p129 = por %p127, %p128
      %p130 = scmp.ne.s32.totalorder %s118, %s119
      %p131 = scmp.eq.s32.totalorder %s32, 1
      %p132 = por %p130, %p131
      %p134 = scmp.ne.s32.totalorder %s119, %s133
      %p135 = scmp.eq.s32.totalorder %s32, 0
      %p136 = por %p134, %p135
      %s138 = sadd.s32 %s137, 1
      %p141 = scmp.eq.s32.totalorder %s26, 1
      %p142 = scmp.ne.s32.totalorder %s137, %s139
      %p143 = scmp.eq.s32.totalorder %s26, 0
      %p144 = por %p142, %p143
      %p145 = scmp.ne.s32.totalorder %s137, %s139
      %p146 = scmp.eq.s32.totalorder %s31, 1
      %p147 = por %p145, %p146
      %p148 = scmp.ne.s32.totalorder %s139, %s140
      %p149 = scmp.eq.s32.totalorder %s31, 0
      %p150 = por %p148, %p149
      %p151 = scmp.ne.s32.totalorder %s139, %s140
      %p152 = scmp.eq.s32.totalorder %s32, 1
      %p153 = por %p151, %p152
      %p155 = scmp.ne.s32.totalorder %s140, %s154
      %p156 = scmp.eq.s32.totalorder %s32, 0
      %p157 = por %p155, %p156
      %s159 = sadd.s32 %s158, 1
      %p162 = scmp.eq.s32.totalorder %s26, 1
      %p163 = scmp.ne.s32.totalorder %s158, %s160
      %p164 = scmp.eq.s32.totalorder %s26, 0
      %p165 = por %p163, %p164
      %p166 = scmp.ne.s32.totalorder %s158, %s160
      %p167 = scmp.eq.s32.totalorder %s31, 1
      %p168 = por %p166, %p167
      %p169 = scmp.ne.s32.totalorder %s160, %s161
      %p170 = scmp.eq.s32.totalorder %s31, 0
      %p171 = por %p169, %p170
      %p172 = scmp.ne.s32.totalorder %s160, %s161
      %p173 = scmp.eq.s32.totalorder %s32, 1
      %p174 = por %p172, %p173
      %p176 = scmp.ne.s32.totalorder %s161, %s175
      %p177 = scmp.eq.s32.totalorder %s32, 0
      %p178 = por %p176, %p177
      %s180 = sadd.s32 %s179, 1
      %p183 = scmp.eq.s32.totalorder %s26, 1
      %p184 = scmp.ne.s32.totalorder %s179, %s181
      %p185 = scmp.eq.s32.totalorder %s26, 0
      %p186 = por %p184, %p185
      %p187 = scmp.ne.s32.totalorder %s179, %s181
      %p188 = scmp.eq.s32.totalorder %s31, 1
      %p189 = por %p187, %p188
      %p190 = scmp.ne.s32.totalorder %s181, %s182
      %p191 = scmp.eq.s32.totalorder %s31, 0
      %p192 = por %p190, %p191
      %p193 = scmp.ne.s32.totalorder %s181, %s182
      %p194 = scmp.eq.s32.totalorder %s32, 1
      %p195 = por %p193, %p194
      %p197 = scmp.ne.s32.totalorder %s182, %s196
      %p198 = scmp.eq.s32.totalorder %s32, 0
      %p199 = por %p197, %p198
      %s201 = sadd.s32 %s200, 1
      %p204 = scmp.eq.s32.totalorder %s26, 1
      %p205 = scmp.ne.s32.totalorder %s200, %s202
      %p206 = scmp.eq.s32.totalorder %s26, 0
      %p207 = por %p205, %p206
      %p208 = scmp.ne.s32.totalorder %s200, %s202
      %p209 = scmp.eq.s32.totalorder %s31, 1
      %p210 = por %p208, %p209
      %p211 = scmp.ne.s32.totalorder %s202, %s203
      %p212 = scmp.eq.s32.totalorder %s31, 0
      %p213 = por %p211, %p212
      %p214 = scmp.ne.s32.totalorder %s202, %s203
      %p215 = scmp.eq.s32.totalorder %s32, 1
      %p216 = por %p214, %p215
      %p218 = scmp.ne.s32.totalorder %s203, %s217
      %p219 = scmp.eq.s32.totalorder %s32, 0
      %p220 = por %p218, %p219
      %s222 = sadd.s32 %s221, 1
      %p225 = scmp.eq.s32.totalorder %s26, 1
      %p226 = scmp.ne.s32.totalorder %s221, %s223
      %p227 = scmp.eq.s32.totalorder %s26, 0
      %p228 = por %p226, %p227
      %p229 = scmp.ne.s32.totalorder %s221, %s223
      %p230 = scmp.eq.s32.totalorder %s31, 1
      %p231 = por %p229, %p230
      %p232 = scmp.ne.s32.totalorder %s223, %s224
      %p233 = scmp.eq.s32.totalorder %s31, 0
      %p234 = por %p232, %p233
      %p235 = scmp.ne.s32.totalorder %s223, %s224
      %p236 = scmp.eq.s32.totalorder %s32, 1
      %p237 = por %p235, %p236
      %p239 = scmp.ne.s32.totalorder %s224, %s238
      %p240 = scmp.eq.s32.totalorder %s32, 0
      %p241 = por %p239, %p240
      %s243 = sadd.s32 %s242, 1
      %p246 = scmp.eq.s32.totalorder %s26, 1
      %p247 = scmp.ne.s32.totalorder %s242, %s244
      %p248 = scmp.eq.s32.totalorder %s26, 0
      %p249 = por %p247, %p248
      %p250 = scmp.ne.s32.totalorder %s242, %s244
      %p251 = scmp.eq.s32.totalorder %s31, 1
      %p252 = por %p250, %p251
      %p253 = scmp.ne.s32.totalorder %s244, %s245
      %p254 = scmp.eq.s32.totalorder %s31, 0
      %p255 = por %p253, %p254
      %p256 = scmp.ne.s32.totalorder %s244, %s245
      %p257 = scmp.eq.s32.totalorder %s32, 1
      %p258 = por %p256, %p257
      %p260 = scmp.ne.s32.totalorder %s245, %s259
      %p261 = scmp.eq.s32.totalorder %s32, 0
      %p262 = por %p260, %p261
      %s264 = sadd.s32 %s263, 1
      %p267 = scmp.eq.s32.totalorder %s26, 1
      %p268 = scmp.ne.s32.totalorder %s263, %s265
      %p269 = scmp.eq.s32.totalorder %s26, 0
      %p270 = por %p268, %p269
      %p271 = scmp.ne.s32.totalorder %s263, %s265
      %p272 = scmp.eq.s32.totalorder %s31, 1
      %p273 = por %p271, %p272
      %p274 = scmp.ne.s32.totalorder %s265, %s266
      %p275 = scmp.eq.s32.totalorder %s31, 0
      %p276 = por %p274, %p275
      %p277 = scmp.ne.s32.totalorder %s265, %s266
      %p278 = scmp.eq.s32.totalorder %s32, 1
      %p279 = por %p277, %p278
      %p281 = scmp.ne.s32.totalorder %s266, %s280
      %p282 = scmp.eq.s32.totalorder %s32, 0
      %p283 = por %p281, %p282
      %s284 = ssub.s32 %s33, %s45
      %s285 = ssub.s32 %s34, %s41
      %s286 = sor.u32 %s284, %s285
      %p287 = scmp.eq.s32.totalorder %s286, 0
      %s289 = sadd.s32 %s288, 1
      %s290 = scalar_select %p287, %s288, %s289
      %p293 = pneg %p287
      %p294 = scmp.eq.s32.totalorder %s26, 1
      %p295 = por %p293, %p294
      %p296 = scmp.ne.s32.totalorder %s288, %s291
      %p297 = scmp.eq.s32.totalorder %s26, 0
      %p298 = por %p296, %p297
      %p299 = scmp.ne.s32.totalorder %s288, %s291
      %p300 = scmp.eq.s32.totalorder %s31, 1
      %p301 = por %p299, %p300
      %p302 = scmp.ne.s32.totalorder %s291, %s292
      %p303 = scmp.eq.s32.totalorder %s31, 0
      %p304 = por %p302, %p303
      %p305 = scmp.ne.s32.totalorder %s291, %s292
      %p306 = scmp.eq.s32.totalorder %s32, 1
      %p307 = por %p305, %p306
      %p309 = scmp.ne.s32.totalorder %s292, %s308
      %p310 = scmp.eq.s32.totalorder %s32, 0
      %p311 = por %p309, %p310
      %p312 = scmp.le.s32.totalorder 1, %s26
      %p313 = scmp.lt.s32.totalorder %s26, 3
      %p314 = pnand %p312, %p313
      %p315 = pneg %p314
      // Predicated region
      $region9: #{tpu_custom_call.1} parent=5 // pred_check
        _
      $region10: #{tpu_custom_call.1} parent=5 // pred_check_branch
        %317 = sbr.rel (%p314) target = $region12
      $region11: #{tpu_custom_call.1} parent=5 // pred_region
        %s318 = ssub.s32 %s26, 1
        // Predicated region
        $region13: #{tpu_custom_call.1} parent=11 // pred_check
          %p319 = pneg %p87
        $region14: #{tpu_custom_call.1} parent=11 // pred_check_branch
          %321 = sbr.rel (%p319) target = $region16
        $region15: #{tpu_custom_call.1} parent=11 // pred_region
          %s323 = ssub.s32 4096, 4096
          %324 = vsyncadd [#allocation9], %s323
          %s325 = sshll.u32 [#allocation8], 4
          %s326 = int_to_ptr.vmem [resolvable:$true] %s325
          %331 = dma.hbm_to_vmem [thread:$0]  %s1, 4096, %s326, [#allocation9], 128, 128, 8
        $region16: #{tpu_custom_call.1} parent=11 // pred_fallthru
          _
        // Predicated region
        $region17: #{tpu_custom_call.1} parent=11 // pred_check
          %p332 = pneg %p108
        $region18: #{tpu_custom_call.1} parent=11 // pred_check_branch
          %334 = sbr.rel (%p332) target = $region20
        $region19: #{tpu_custom_call.1} parent=11 // pred_region
          _
        $region20: #{tpu_custom_call.1} parent=11 // pred_fallthru
          _
        // Predicated region
        $region21: #{tpu_custom_call.1} parent=11 // pred_check
          %p335 = pneg %p129
        $region22: #{tpu_custom_call.1} parent=11 // pred_check_branch
          %337 = sbr.rel (%p335) target = $region24
        $region23: #{tpu_custom_call.1} parent=11 // pred_region
          %s339 = ssub.s32 4096, 4096
          %340 = vsyncadd [#allocation9], %s339
          %s341 = sshll.u32 [#allocation10], 4
          %s342 = int_to_ptr.vmem [resolvable:$true] %s341
          %347 = dma.hbm_to_vmem [thread:$0]  %s3, 4096, %s342, [#allocation9], 128, 128, 8
        $region24: #{tpu_custom_call.1} parent=11 // pred_fallthru
          _
        // Predicated region
        $region25: #{tpu_custom_call.1} parent=11 // pred_check
          %p348 = pneg %p150
        $region26: #{tpu_custom_call.1} parent=11 // pred_check_branch
          %350 = sbr.rel (%p348) target = $region28
        $region27: #{tpu_custom_call.1} parent=11 // pred_region
          _
        $region28: #{tpu_custom_call.1} parent=11 // pred_fallthru
          _
        // Predicated region
        $region29: #{tpu_custom_call.1} parent=11 // pred_check
          %p351 = pneg %p171
        $region30: #{tpu_custom_call.1} parent=11 // pred_check_branch
          %353 = sbr.rel (%p351) target = $region32
        $region31: #{tpu_custom_call.1} parent=11 // pred_region
          %s355 = ssub.s32 2048, 2048
          %356 = vsyncadd [#allocation12], %s355
          %s357 = sshll.u32 [#allocation11], 4
          %s358 = int_to_ptr.vmem [resolvable:$true] %s357
          %363 = dma.hbm_to_vmem [thread:$0]  %s5, 2048, %s358, [#allocation12], 128, 128, 8
        $region32: #{tpu_custom_call.1} parent=11 // pred_fallthru
          _
        // Predicated region
        $region33: #{tpu_custom_call.1} parent=11 // pred_check
          %p364 = pneg %p192
        $region34: #{tpu_custom_call.1} parent=11 // pred_check_branch
          %366 = sbr.rel (%p364) target = $region36
        $region35: #{tpu_custom_call.1} parent=11 // pred_region
          _
        $region36: #{tpu_custom_call.1} parent=11 // pred_fallthru
          _
        // Predicated region
        $region37: #{tpu_custom_call.1} parent=11 // pred_check
          %p367 = pneg %p213
        $region38: #{tpu_custom_call.1} parent=11 // pred_check_branch
          %369 = sbr.rel (%p367) target = $region40
        $region39: #{tpu_custom_call.1} parent=11 // pred_region
          %s371 = ssub.s32 4096, 4096
          %372 = vsyncadd [#allocation12], %s371
          %s373 = sshll.u32 [#allocation13], 4
          %s374 = int_to_ptr.vmem [resolvable:$true] %s373
          %379 = dma.hbm_to_vmem [thread:$0]  %s7, 4096, %s374, [#allocation12], 128, 128, 8
        $region40: #{tpu_custom_call.1} parent=11 // pred_fallthru
          _
        // Predicated region
        $region41: #{tpu_custom_call.1} parent=11 // pred_check
          %p380 = pneg %p234
        $region42: #{tpu_custom_call.1} parent=11 // pred_check_branch
          %382 = sbr.rel (%p380) target = $region44
        $region43: #{tpu_custom_call.1} parent=11 // pred_region
          _
        $region44: #{tpu_custom_call.1} parent=11 // pred_fallthru
          _
        // Predicated region
        $region45: #{tpu_custom_call.1} parent=11 // pred_check
          %p383 = pneg %p255
        $region46: #{tpu_custom_call.1} parent=11 // pred_check_branch
          %385 = sbr.rel (%p383) target = $region48
        $region47: #{tpu_custom_call.1} parent=11 // pred_region
          %s387 = ssub.s32 4096, 4096
          %388 = vsyncadd [#allocation15], %s387
          %s389 = sshll.u32 [#allocation14], 4
          %s390 = int_to_ptr.vmem [resolvable:$true] %s389
          %395 = dma.hbm_to_vmem [thread:$0]  %s9, 4096, %s390, [#allocation15], 128, 128, 8
        $region48: #{tpu_custom_call.1} parent=11 // pred_fallthru
          _
        // Predicated region
        $region49: #{tpu_custom_call.1} parent=11 // pred_check
          %p396 = pneg %p276
        $region50: #{tpu_custom_call.1} parent=11 // pred_check_branch
          %398 = sbr.rel (%p396) target = $region52
        $region51: #{tpu_custom_call.1} parent=11 // pred_region
          _
        $region52: #{tpu_custom_call.1} parent=11 // pred_fallthru
          _
      $region12: #{tpu_custom_call.1} parent=5 // pred_fallthru
        _
      %p399 = scmp.lt.s32.totalorder %s26, 2
      // Predicated region
      $region53: #{tpu_custom_call.1} parent=5 // pred_check
        %p400 = pneg %p399
      $region54: #{tpu_custom_call.1} parent=5 // pred_check_branch
        %402 = sbr.rel (%p400) target = $region56
      $region55: #{tpu_custom_call.1} parent=5 // pred_region
        // Predicated region
        $region57: #{tpu_custom_call.1} parent=55 // pred_check
          %p403 = pneg %p60
        $region58: #{tpu_custom_call.1} parent=55 // pred_check_branch
          %405 = sbr.rel (%p403) target = $region60
        $region59: #{tpu_custom_call.1} parent=55 // pred_region
          %s406 = sand.u32 %s50, 1
          %s407 = scalar_lea.sflag [#allocation6], %s406
          %s408 = sand.u32 %s50, 1
          %s409 = smul.addr %s408, 16
          %s410 = scalar_lea.vmem [#allocation5], %s409
          %s411 = smul.u32 2, %s34
          %s413 = ssub.s32 256, 256
          %414 = vsyncadd %s407, %s413
          %s415 = smul.addr %s33, 2
          %s416 = sadd.s32 %s411, %s415
          %s417 = smul.addr %s416, 128
          %s418 = scalar_lea.hbm %s0, %s417
          %s419 = sshll.u32 %s410, 4
          %s420 = int_to_ptr.vmem [resolvable:$true] %s419
          %425 = dma.hbm_to_vmem [thread:$0]  %s418, 256, %s420, %s407, 128, 128, 8
        $region60: #{tpu_custom_call.1} parent=55 // pred_fallthru
          _
      $region56: #{tpu_custom_call.1} parent=5 // pred_fallthru
        _
      %p426 = scmp.le.s32.totalorder 1, %s26
      %p427 = scmp.lt.s32.totalorder %s26, 3
      %p428 = pnand %p426, %p427
      %p429 = pneg %p428
      // Predicated region
      $region61: #{tpu_custom_call.1} parent=5 // pred_check
        _
      $region62: #{tpu_custom_call.1} parent=5 // pred_check_branch
        %431 = sbr.rel (%p428) target = $region64
      $region63: #{tpu_custom_call.1} parent=5 // pred_region
        %s432 = ssub.s32 %s26, 1
        %s433 = sand.u32 %s53, 1
        %s434 = scalar_lea.sflag [#allocation6], %s433
        %s435 = sand.u32 %s53, 1
        %s436 = smul.addr %s435, 16
        %s437 = scalar_lea.vmem [#allocation5], %s436
        // Predicated region
        $region65: #{tpu_custom_call.1} parent=63 // pred_check
          %p438 = pneg %p66
        $region66: #{tpu_custom_call.1} parent=63 // pred_check_branch
          %440 = sbr.rel (%p438) target = $region68
        $region67: #{tpu_custom_call.1} parent=63 // pred_region
          %441 = dma.done %s434, 256
        $region68: #{tpu_custom_call.1} parent=63 // pred_fallthru
          _
        // Predicated region
        $region69: #{tpu_custom_call.1} parent=63 // pred_check
          %p442 = pneg %p87
        $region70: #{tpu_custom_call.1} parent=63 // pred_check_branch
          %444 = sbr.rel (%p442) target = $region72
        $region71: #{tpu_custom_call.1} parent=63 // pred_region
          %445 = dma.done [#allocation9], 4096
        $region72: #{tpu_custom_call.1} parent=63 // pred_fallthru
          _
        // Predicated region
        $region73: #{tpu_custom_call.1} parent=63 // pred_check
          %p446 = pneg %p129
        $region74: #{tpu_custom_call.1} parent=63 // pred_check_branch
          %448 = sbr.rel (%p446) target = $region76
        $region75: #{tpu_custom_call.1} parent=63 // pred_region
          %449 = dma.done [#allocation9], 4096
        $region76: #{tpu_custom_call.1} parent=63 // pred_fallthru
          _
        // Predicated region
        $region77: #{tpu_custom_call.1} parent=63 // pred_check
          %p450 = pneg %p171
        $region78: #{tpu_custom_call.1} parent=63 // pred_check_branch
          %452 = sbr.rel (%p450) target = $region80
        $region79: #{tpu_custom_call.1} parent=63 // pred_region
          %453 = dma.done [#allocation12], 2048
        $region80: #{tpu_custom_call.1} parent=63 // pred_fallthru
          _
        // Predicated region
        $region81: #{tpu_custom_call.1} parent=63 // pred_check
          %p454 = pneg %p213
        $region82: #{tpu_custom_call.1} parent=63 // pred_check_branch
          %456 = sbr.rel (%p454) target = $region84
        $region83: #{tpu_custom_call.1} parent=63 // pred_region
          %457 = dma.done [#allocation12], 4096
        $region84: #{tpu_custom_call.1} parent=63 // pred_fallthru
          _
        // Predicated region
        $region85: #{tpu_custom_call.1} parent=63 // pred_check
          %p458 = pneg %p255
        $region86: #{tpu_custom_call.1} parent=63 // pred_check_branch
          %460 = sbr.rel (%p458) target = $region88
        $region87: #{tpu_custom_call.1} parent=63 // pred_region
          %461 = dma.done [#allocation15], 4096
        $region88: #{tpu_custom_call.1} parent=63 // pred_fallthru
          _
        %s462 = sand.u32 %s53, 1
        %s463 = scalar_lea.sflag [#allocation6], %s462
        %s464 = sand.u32 %s53, 1
        %s465 = smul.addr %s464, 16
        %s466 = scalar_lea.vmem [#allocation5], %s465
        %p467 = pneg %p66
        %p468 = pneg %p63
        %p469 = pneg %p87
        %p470 = pneg %p84
        %p471 = pneg %p108
        %p472 = pneg %p105
        %p473 = pneg %p129
        %p474 = pneg %p126
        %p475 = pneg %p150
        %p476 = pneg %p147
        %p477 = pneg %p171
        %p478 = pneg %p168
        %p479 = pneg %p192
        %p480 = pneg %p189
        %p481 = pneg %p213
        %p482 = pneg %p210
        %p483 = pneg %p234
        %p484 = pneg %p231
        %p485 = pneg %p255
        %p486 = pneg %p252
        %p487 = pneg %p276
        %p488 = pneg %p273
        %p489 = pneg %p304
        %p490 = pneg %p301
        %s491 = sand.u32 %s291, 1
        %s492 = scalar_lea.sflag [#allocation7], %s491
        %s493 = sand.u32 %s291, 1
        %s494 = smul.addr %s493, 16
        %s495 = scalar_lea.vmem [#allocation16], %s494
        %s496 = smul.u32 2, %s36
        %s497 = smul.u32 2, %s36
        %p498 = scmp.eq.s32.totalorder %s36, 0
        // Predicated region
        $region89: #{tpu_custom_call.1} parent=63 // pred_check
          %p499 = pneg %p498
        $region90: #{tpu_custom_call.1} parent=63 // pred_check_branch
          %501 = sbr.rel (%p499) target = $region92
        $region91: #{tpu_custom_call.1} parent=63 // pred_region
          %502 = vst [vmem:[#allocation3] sm:$0x3] 0.0
          %503 = vst [vmem:[#allocation3 + $0x2] sm:$0x3] 0.0
          %504 = vst [vmem:[#allocation4] sm:$0x3] 0.0
          %505 = vst [vmem:[#allocation4 + $0x2] sm:$0x3] 0.0
        $region92: #{tpu_custom_call.1} parent=63 // pred_fallthru
          _
        %v506 = vld [vmem:[%s437] sm:$0xff]
        %v507 = vld [vmem:[%s437 + $0x8] sm:$0xff]
        %v508 = vld [vmem:[#allocation3 + $0x1] sm:$0x1]
        %509 = vst [vmem:[#allocation2] sm:$0x1] %v508
        %vm512 = vcmask 1040384
        %v513 = vrot.slane %v506, 7
        %v514 = vrot.slane %v507, 7
        %v515 = vsel %vm512, %v513, %v514
        %518 = vst [vmem:[#allocation2] sm:$0xfe] %v513
        %519 = vst [vmem:[#allocation2 + $0x10] sm:$0xff] %v515
        %520 = vst [vmem:[#allocation2 + $0x8] sm:$0xff] %v506
        %521 = vst [vmem:[#allocation2 + $0x18] sm:$0xff] %v507
        %v522 = vld [vmem:[#allocation2] sm:$0xff]
        %v523 = vld [vmem:[#allocation2 + $0x8] sm:$0xff]
        %v524 = vld [vmem:[#allocation2 + $0x10] sm:$0xff]
        %v525 = vld [vmem:[#allocation2 + $0x18] sm:$0xff]
        %v526 = vld [vmem:[#allocation8] sm:$0xff]
        %v527 = vld [vmem:[#allocation8 + $0x8] sm:$0xff]
        %v528 = vld [vmem:[#allocation8 + $0x10] sm:$0xff]
        %v529 = vld [vmem:[#allocation8 + $0x18] sm:$0xff]
        %v530 = vld [vmem:[#allocation8 + $0x20] sm:$0xff]
        %v531 = vld [vmem:[#allocation8 + $0x28] sm:$0xff]
        %v532 = vld [vmem:[#allocation8 + $0x30] sm:$0xff]
        %v533 = vld [vmem:[#allocation8 + $0x38] sm:$0xff]
        %v534 = vld [vmem:[#allocation8 + $0x40] sm:$0xff]
        %v535 = vld [vmem:[#allocation8 + $0x48] sm:$0xff]
        %v536 = vld [vmem:[#allocation8 + $0x50] sm:$0xff]
        %v537 = vld [vmem:[#allocation8 + $0x58] sm:$0xff]
        %v538 = vld [vmem:[#allocation8 + $0x60] sm:$0xff]
        %v539 = vld [vmem:[#allocation8 + $0x68] sm:$0xff]
        %v540 = vld [vmem:[#allocation8 + $0x70] sm:$0xff]
        %v541 = vld [vmem:[#allocation8 + $0x78] sm:$0xff]
        %v542 = vld [vmem:[#allocation8 + $0x80] sm:$0xff]
        %v543 = vld [vmem:[#allocation8 + $0x88] sm:$0xff]
        %v544 = vld [vmem:[#allocation8 + $0x90] sm:$0xff]
        %v545 = vld [vmem:[#allocation8 + $0x98] sm:$0xff]
        %v546 = vld [vmem:[#allocation8 + $0xa0] sm:$0xff]
        %v547 = vld [vmem:[#allocation8 + $0xa8] sm:$0xff]
        %v548 = vld [vmem:[#allocation8 + $0xb0] sm:$0xff]
        %v549 = vld [vmem:[#allocation8 + $0xb8] sm:$0xff]
        %v550 = vld [vmem:[#allocation8 + $0xc0] sm:$0xff]
        %v551 = vld [vmem:[#allocation8 + $0xc8] sm:$0xff]
        %v552 = vld [vmem:[#allocation8 + $0xd0] sm:$0xff]
        %v553 = vld [vmem:[#allocation8 + $0xd8] sm:$0xff]
        %v554 = vld [vmem:[#allocation8 + $0xe0] sm:$0xff]
        %v555 = vld [vmem:[#allocation8 + $0xe8] sm:$0xff]
        %v556 = vld [vmem:[#allocation8 + $0xf0] sm:$0xff]
        %v557 = vld [vmem:[#allocation8 + $0xf8] sm:$0xff]
        %v558 = vld [vmem:[%s2] sm:$0x1]
        %v560 = vlaneseq
        %v561 = vshrl.u32 %v560, 7
        %v562 = vsub.s32 0, %v561
        %v563 = vrot.slane %v558, %v562
        %565 = vmatprep.subr.mxu0 0.0
        %566 = vmatpush1.msra.mxu0 %v526
        %567 = vmatprep.subr.mxu0 0.0
        %568 = vmatpush1.msra.mxu0 %v527
        %569 = vmatprep.subr.mxu0 0.0
        %570 = vmatpush1.msra.mxu0 %v528
        %571 = vmatprep.subr.mxu0 0.0
        %572 = vmatpush1.msra.mxu0 %v529
        %573 = vmatprep.subr.mxu0 0.0
        %574 = vmatpush1.msra.mxu0 %v530
        %575 = vmatprep.subr.mxu0 0.0
        %576 = vmatpush1.msra.mxu0 %v531
        %577 = vmatprep.subr.mxu0 0.0
        %578 = vmatpush1.msra.mxu0 %v532
        %579 = vmatprep.subr.mxu0 0.0
        %580 = vmatpush1.msra.mxu0 %v533
        %581 = vmatprep.subr.mxu0 0.0
        %582 = vmatpush1.msra.mxu0 %v534
        %583 = vmatprep.subr.mxu0 0.0
        %584 = vmatpush1.msra.mxu0 %v535
        %585 = vmatprep.subr.mxu0 0.0
        %586 = vmatpush1.msra.mxu0 %v536
        %587 = vmatprep.subr.mxu0 0.0
        %588 = vmatpush1.msra.mxu0 %v537
        %589 = vmatprep.subr.mxu0 0.0
        %590 = vmatpush1.msra.mxu0 %v538
        %591 = vmatprep.subr.mxu0 0.0
        %592 = vmatpush1.msra.mxu0 %v539
        %593 = vmatprep.subr.mxu0 0.0
        %594 = vmatpush1.msra.mxu0 %v540
        %595 = vmatprep.subr.mxu0 0.0
        %596 = vmatpush1.msra.mxu0 %v541
        %597 = vmatprep.subr.mxu0 0.0
        %598 = vmatpush1.msra.mxu0 %v542
        %599 = vmatprep.subr.mxu0 0.0
        %600 = vmatpush1.msra.mxu0 %v543
        %601 = vmatprep.subr.mxu0 0.0
        %602 = vmatpush1.msra.mxu0 %v544
        %603 = vmatprep.subr.mxu0 0.0
        %604 = vmatpush1.msra.mxu0 %v545
        %605 = vmatprep.subr.mxu0 0.0
        %606 = vmatpush1.msra.mxu0 %v546
        %607 = vmatprep.subr.mxu0 0.0
        %608 = vmatpush1.msra.mxu0 %v547
        %609 = vmatprep.subr.mxu0 0.0
        %610 = vmatpush1.msra.mxu0 %v548
        %611 = vmatprep.subr.mxu0 0.0
        %612 = vmatpush1.msra.mxu0 %v549
        %613 = vmatprep.subr.mxu0 0.0
        %614 = vmatpush1.msra.mxu0 %v550
        %615 = vmatprep.subr.mxu0 0.0
        %616 = vmatpush1.msra.mxu0 %v551
        %617 = vmatprep.subr.mxu0 0.0
        %618 = vmatpush1.msra.mxu0 %v552
        %619 = vmatprep.subr.mxu0 0.0
        %620 = vmatpush1.msra.mxu0 %v553
        %621 = vmatprep.subr.mxu0 0.0
        %622 = vmatpush1.msra.mxu0 %v554
        %623 = vmatprep.subr.mxu0 0.0
        %624 = vmatpush1.msra.mxu0 %v555
        %625 = vmatprep.subr.mxu0 0.0
        %626 = vmatpush1.msra.mxu0 %v556
        %627 = vmatprep.subr.mxu0 0.0
        %628 = vmatpush1.msra.mxu0 %v557
        %629 = vmatprep.mubr.f32.mxu0 %v523
        %630 = vmatmul.mubr.f32.gmra.mrb[0].mxu0 %v522
        %v631 = vpop.f32.mrb[0].mxu0
        %v632 = vadd.f32 %v563, %v631
        %v633 = vpop.f32.mrb[0].mxu0
        %634 = vmatprep.mubr.f32.mxu0 %v525
        %635 = vmatmul.mubr.f32.gmra.mrb[0].mxu0 %v524
        %v636 = vpop.f32.mrb[0].mxu0
        %v637 = vadd.f32 %v563, %v636
        %v638 = vpop.f32.mrb[0].mxu0
        %639 = vdwg.mxu0
        %v640 = vmax.f32 %v632, 0.0
        %v641 = vmax.f32 %v637, 0.0
        %v642 = vld [vmem:[#allocation4 + $0x1] sm:$0x1]
        %643 = vst [vmem:[#allocation2] sm:$0x1] %v642
        %v646 = vrot.slane %v640, 7
        %v647 = vrot.slane %v641, 7
        %v648 = vsel %vm512, %v646, %v647
        %651 = vst [vmem:[#allocation2] sm:$0xfe] %v646
        %652 = vst [vmem:[#allocation2 + $0x10] sm:$0xff] %v648
        %653 = vst [vmem:[#allocation2 + $0x8] sm:$0xff] %v640
        %654 = vst [vmem:[#allocation2 + $0x18] sm:$0xff] %v641
        %v655 = vld [vmem:[#allocation2] sm:$0xff]
        %v656 = vld [vmem:[#allocation2 + $0x8] sm:$0xff]
        %v657 = vld [vmem:[#allocation2 + $0x10] sm:$0xff]
        %v658 = vld [vmem:[#allocation2 + $0x18] sm:$0xff]
        %v659 = vld [vmem:[#allocation10] sm:$0xff]
        %v660 = vld [vmem:[#allocation10 + $0x8] sm:$0xff]
        %v661 = vld [vmem:[#allocation10 + $0x10] sm:$0xff]
        %v662 = vld [vmem:[#allocation10 + $0x18] sm:$0xff]
        %v663 = vld [vmem:[#allocation10 + $0x20] sm:$0xff]
        %v664 = vld [vmem:[#allocation10 + $0x28] sm:$0xff]
        %v665 = vld [vmem:[#allocation10 + $0x30] sm:$0xff]
        %v666 = vld [vmem:[#allocation10 + $0x38] sm:$0xff]
        %v667 = vld [vmem:[#allocation10 + $0x40] sm:$0xff]
        %v668 = vld [vmem:[#allocation10 + $0x48] sm:$0xff]
        %v669 = vld [vmem:[#allocation10 + $0x50] sm:$0xff]
        %v670 = vld [vmem:[#allocation10 + $0x58] sm:$0xff]
        %v671 = vld [vmem:[#allocation10 + $0x60] sm:$0xff]
        %v672 = vld [vmem:[#allocation10 + $0x68] sm:$0xff]
        %v673 = vld [vmem:[#allocation10 + $0x70] sm:$0xff]
        %v674 = vld [vmem:[#allocation10 + $0x78] sm:$0xff]
        %v675 = vld [vmem:[#allocation10 + $0x80] sm:$0xff]
        %v676 = vld [vmem:[#allocation10 + $0x88] sm:$0xff]
        %v677 = vld [vmem:[#allocation10 + $0x90] sm:$0xff]
        %v678 = vld [vmem:[#allocation10 + $0x98] sm:$0xff]
        %v679 = vld [vmem:[#allocation10 + $0xa0] sm:$0xff]
        %v680 = vld [vmem:[#allocation10 + $0xa8] sm:$0xff]
        %v681 = vld [vmem:[#allocation10 + $0xb0] sm:$0xff]
        %v682 = vld [vmem:[#allocation10 + $0xb8] sm:$0xff]
        %v683 = vld [vmem:[#allocation10 + $0xc0] sm:$0xff]
        %v684 = vld [vmem:[#allocation10 + $0xc8] sm:$0xff]
        %v685 = vld [vmem:[#allocation10 + $0xd0] sm:$0xff]
        %v686 = vld [vmem:[#allocation10 + $0xd8] sm:$0xff]
        %v687 = vld [vmem:[#allocation10 + $0xe0] sm:$0xff]
        %v688 = vld [vmem:[#allocation10 + $0xe8] sm:$0xff]
        %v689 = vld [vmem:[#allocation10 + $0xf0] sm:$0xff]
        %v690 = vld [vmem:[#allocation10 + $0xf8] sm:$0xff]
        %v691 = vld [vmem:[%s4] sm:$0x1]
        %v693 = vlaneseq
        %v694 = vshrl.u32 %v693, 7
        %v695 = vsub.s32 0, %v694
        %v696 = vrot.slane %v691, %v695
        %698 = vmatprep.subr.mxu0 0.0
        %699 = vmatpush1.msra.mxu0 %v659
        %700 = vmatprep.subr.mxu0 0.0
        %701 = vmatpush1.msra.mxu0 %v660
        %702 = vmatprep.subr.mxu0 0.0
        %703 = vmatpush1.msra.mxu0 %v661
        %704 = vmatprep.subr.mxu0 0.0
        %705 = vmatpush1.msra.mxu0 %v662
        %706 = vmatprep.subr.mxu0 0.0
        %707 = vmatpush1.msra.mxu0 %v663
        %708 = vmatprep.subr.mxu0 0.0
        %709 = vmatpush1.msra.mxu0 %v664
        %710 = vmatprep.subr.mxu0 0.0
        %711 = vmatpush1.msra.mxu0 %v665
        %712 = vmatprep.subr.mxu0 0.0
        %713 = vmatpush1.msra.mxu0 %v666
        %714 = vmatprep.subr.mxu0 0.0
        %715 = vmatpush1.msra.mxu0 %v667
        %716 = vmatprep.subr.mxu0 0.0
        %717 = vmatpush1.msra.mxu0 %v668
        %718 = vmatprep.subr.mxu0 0.0
        %719 = vmatpush1.msra.mxu0 %v669
        %720 = vmatprep.subr.mxu0 0.0
        %721 = vmatpush1.msra.mxu0 %v670
        %722 = vmatprep.subr.mxu0 0.0
        %723 = vmatpush1.msra.mxu0 %v671
        %724 = vmatprep.subr.mxu0 0.0
        %725 = vmatpush1.msra.mxu0 %v672
        %726 = vmatprep.subr.mxu0 0.0
        %727 = vmatpush1.msra.mxu0 %v673
        %728 = vmatprep.subr.mxu0 0.0
        %729 = vmatpush1.msra.mxu0 %v674
        %730 = vmatprep.subr.mxu0 0.0
        %731 = vmatpush1.msra.mxu0 %v675
        %732 = vmatprep.subr.mxu0 0.0
        %733 = vmatpush1.msra.mxu0 %v676
        %734 = vmatprep.subr.mxu0 0.0
        %735 = vmatpush1.msra.mxu0 %v677
        %736 = vmatprep.subr.mxu0 0.0
        %737 = vmatpush1.msra.mxu0 %v678
        %738 = vmatprep.subr.mxu0 0.0
        %739 = vmatpush1.msra.mxu0 %v679
        %740 = vmatprep.subr.mxu0 0.0
        %741 = vmatpush1.msra.mxu0 %v680
        %742 = vmatprep.subr.mxu0 0.0
        %743 = vmatpush1.msra.mxu0 %v681
        %744 = vmatprep.subr.mxu0 0.0
        %745 = vmatpush1.msra.mxu0 %v682
        %746 = vmatprep.subr.mxu0 0.0
        %747 = vmatpush1.msra.mxu0 %v683
        %748 = vmatprep.subr.mxu0 0.0
        %749 = vmatpush1.msra.mxu0 %v684
        %750 = vmatprep.subr.mxu0 0.0
        %751 = vmatpush1.msra.mxu0 %v685
        %752 = vmatprep.subr.mxu0 0.0
        %753 = vmatpush1.msra.mxu0 %v686
        %754 = vmatprep.subr.mxu0 0.0
        %755 = vmatpush1.msra.mxu0 %v687
        %756 = vmatprep.subr.mxu0 0.0
        %757 = vmatpush1.msra.mxu0 %v688
        %758 = vmatprep.subr.mxu0 0.0
        %759 = vmatpush1.msra.mxu0 %v689
        %760 = vmatprep.subr.mxu0 0.0
        %761 = vmatpush1.msra.mxu0 %v690
        %762 = vmatprep.mubr.f32.mxu0 %v656
        %763 = vmatmul.mubr.f32.gmra.mrb[0].mxu0 %v655
        %v764 = vpop.f32.mrb[0].mxu0
        %v765 = vadd.f32 %v696, %v764
        %v766 = vpop.f32.mrb[0].mxu0
        %767 = vmatprep.mubr.f32.mxu0 %v658
        %768 = vmatmul.mubr.f32.gmra.mrb[0].mxu0 %v657
        %v769 = vpop.f32.mrb[0].mxu0
        %v770 = vadd.f32 %v696, %v769
        %v771 = vpop.f32.mrb[0].mxu0
        %772 = vdwg.mxu0
        %v773 = vmax.f32 %v765, 0.0
        %v774 = vmax.f32 %v770, 0.0
        %v775 = vld [vmem:[#allocation11] sm:$0xff]
        %v776 = vld [vmem:[#allocation11 + $0x8] sm:$0xff]
        %v777 = vld [vmem:[#allocation11 + $0x10] sm:$0xff]
        %v778 = vld [vmem:[#allocation11 + $0x18] sm:$0xff]
        %v779 = vld [vmem:[#allocation11 + $0x20] sm:$0xff]
        %v780 = vld [vmem:[#allocation11 + $0x28] sm:$0xff]
        %v781 = vld [vmem:[#allocation11 + $0x30] sm:$0xff]
        %v782 = vld [vmem:[#allocation11 + $0x38] sm:$0xff]
        %v783 = vld [vmem:[#allocation11 + $0x40] sm:$0xff]
        %v784 = vld [vmem:[#allocation11 + $0x48] sm:$0xff]
        %v785 = vld [vmem:[#allocation11 + $0x50] sm:$0xff]
        %v786 = vld [vmem:[#allocation11 + $0x58] sm:$0xff]
        %v787 = vld [vmem:[#allocation11 + $0x60] sm:$0xff]
        %v788 = vld [vmem:[#allocation11 + $0x68] sm:$0xff]
        %v789 = vld [vmem:[#allocation11 + $0x70] sm:$0xff]
        %v790 = vld [vmem:[#allocation11 + $0x78] sm:$0xff]
        %v791 = vld [vmem:[%s6] sm:$0x1]
        %v793 = vlaneseq
        %v794 = vshrl.u32 %v793, 7
        %v795 = vsub.s32 0, %v794
        %v796 = vrot.slane %v791, %v795
        %798 = vmatprep.subr.mxu0 0.0
        %799 = vmatpush1.msra.mxu0 %v775
        %800 = vmatprep.subr.mxu0 0.0
        %801 = vmatpush1.msra.mxu0 %v776
        %802 = vmatprep.subr.mxu0 0.0
        %803 = vmatpush1.msra.mxu0 %v777
        %804 = vmatprep.subr.mxu0 0.0
        %805 = vmatpush1.msra.mxu0 %v778
        %806 = vmatprep.subr.mxu0 0.0
        %807 = vmatpush1.msra.mxu0 %v779
        %808 = vmatprep.subr.mxu0 0.0
        %809 = vmatpush1.msra.mxu0 %v780
        %810 = vmatprep.subr.mxu0 0.0
        %811 = vmatpush1.msra.mxu0 %v781
        %812 = vmatprep.subr.mxu0 0.0
        %813 = vmatpush1.msra.mxu0 %v782
        %814 = vmatprep.subr.mxu0 0.0
        %815 = vmatpush1.msra.mxu0 %v783
        %816 = vmatprep.subr.mxu0 0.0
        %817 = vmatpush1.msra.mxu0 %v784
        %818 = vmatprep.subr.mxu0 0.0
        %819 = vmatpush1.msra.mxu0 %v785
        %820 = vmatprep.subr.mxu0 0.0
        %821 = vmatpush1.msra.mxu0 %v786
        %822 = vmatprep.subr.mxu0 0.0
        %823 = vmatpush1.msra.mxu0 %v787
        %824 = vmatprep.subr.mxu0 0.0
        %825 = vmatpush1.msra.mxu0 %v788
        %826 = vmatprep.subr.mxu0 0.0
        %827 = vmatpush1.msra.mxu0 %v789
        %828 = vmatprep.subr.mxu0 0.0
        %829 = vmatpush1.msra.mxu0 %v790
        %830 = vmatprep.subr.mxu0 0.0
        %831 = vmatpush1.msra.mxu0 0.0
        %832 = vmatprep.subr.mxu0 0.0
        %833 = vmatpush1.msra.mxu0 0.0
        %834 = vmatprep.subr.mxu0 0.0
        %835 = vmatpush1.msra.mxu0 0.0
        %836 = vmatprep.subr.mxu0 0.0
        %837 = vmatpush1.msra.mxu0 0.0
        %838 = vmatprep.subr.mxu0 0.0
        %839 = vmatpush1.msra.mxu0 0.0
        %840 = vmatprep.subr.mxu0 0.0
        %841 = vmatpush1.msra.mxu0 0.0
        %842 = vmatprep.subr.mxu0 0.0
        %843 = vmatpush1.msra.mxu0 0.0
        %844 = vmatprep.subr.mxu0 0.0
        %845 = vmatpush1.msra.mxu0 0.0
        %846 = vmatprep.subr.mxu0 0.0
        %847 = vmatpush1.msra.mxu0 0.0
        %848 = vmatprep.subr.mxu0 0.0
        %849 = vmatpush1.msra.mxu0 0.0
        %850 = vmatprep.subr.mxu0 0.0
        %851 = vmatpush1.msra.mxu0 0.0
        %852 = vmatprep.subr.mxu0 0.0
        %853 = vmatpush1.msra.mxu0 0.0
        %854 = vmatprep.subr.mxu0 0.0
        %855 = vmatpush1.msra.mxu0 0.0
        %856 = vmatprep.subr.mxu0 0.0
        %857 = vmatpush1.msra.mxu0 0.0
        %858 = vmatprep.subr.mxu0 0.0
        %859 = vmatpush1.msra.mxu0 0.0
        %860 = vmatprep.subr.mxu0 0.0
        %861 = vmatpush1.msra.mxu0 0.0
        %862 = vmatprep.mubr.f32.mxu0 0.0
        %863 = vmatmul.mubr.f32.gmra.mrb[0].mxu0 %v506
        %v864 = vpop.f32.mrb[0].mxu0
        %v865 = vadd.f32 %v796, %v864
        %v866 = vpop.f32.mrb[0].mxu0
        %867 = vmatprep.mubr.f32.mxu0 0.0
        %868 = vmatmul.mubr.f32.gmra.mrb[0].mxu0 %v507
        %v869 = vpop.f32.mrb[0].mxu0
        %v870 = vadd.f32 %v796, %v869
        %v871 = vpop.f32.mrb[0].mxu0
        %872 = vdwg.mxu0
        %v873 = vadd.f32 %v773, %v865
        %v874 = vadd.f32 %v774, %v870
        %v875 = vmax.f32 %v873, 0.0
        %v876 = vmax.f32 %v874, 0.0
        %s877 = scalar_lea.vmem [#allocation3], 2
        %v878 = vld [vmem:[%s877] sm:$0x3]
        %879 = vst [vmem:[#allocation2] sm:$0x3] %v878
        %vm882 = vcmask 1041408
        %v883 = vrot.slane %v875, 6
        %v884 = vrot.slane %v876, 6
        %v885 = vsel %vm882, %v883, %v884
        %888 = vst [vmem:[#allocation2] sm:$0xfc] %v883
        %889 = vst [vmem:[#allocation2 + $0x10] sm:$0xff] %v885
        %890 = vst [vmem:[#allocation2 + $0x8] sm:$0xff] %v875
        %891 = vst [vmem:[#allocation2 + $0x18] sm:$0xff] %v876
        %v892 = vld [vmem:[#allocation2] sm:$0xff]
        %v893 = vld [vmem:[#allocation2 + $0x8] sm:$0xff]
        %v894 = vld [vmem:[#allocation2 + $0x10] sm:$0xff]
        %v895 = vld [vmem:[#allocation2 + $0x18] sm:$0xff]
        %v896 = vld [vmem:[#allocation13] sm:$0xff]
        %v897 = vld [vmem:[#allocation13 + $0x8] sm:$0xff]
        %v898 = vld [vmem:[#allocation13 + $0x10] sm:$0xff]
        %v899 = vld [vmem:[#allocation13 + $0x18] sm:$0xff]
        %v900 = vld [vmem:[#allocation13 + $0x20] sm:$0xff]
        %v901 = vld [vmem:[#allocation13 + $0x28] sm:$0xff]
        %v902 = vld [vmem:[#allocation13 + $0x30] sm:$0xff]
        %v903 = vld [vmem:[#allocation13 + $0x38] sm:$0xff]
        %v904 = vld [vmem:[#allocation13 + $0x40] sm:$0xff]
        %v905 = vld [vmem:[#allocation13 + $0x48] sm:$0xff]
        %v906 = vld [vmem:[#allocation13 + $0x50] sm:$0xff]
        %v907 = vld [vmem:[#allocation13 + $0x58] sm:$0xff]
        %v908 = vld [vmem:[#allocation13 + $0x60] sm:$0xff]
        %v909 = vld [vmem:[#allocation13 + $0x68] sm:$0xff]
        %v910 = vld [vmem:[#allocation13 + $0x70] sm:$0xff]
        %v911 = vld [vmem:[#allocation13 + $0x78] sm:$0xff]
        %v912 = vld [vmem:[#allocation13 + $0x80] sm:$0xff]
        %v913 = vld [vmem:[#allocation13 + $0x88] sm:$0xff]
        %v914 = vld [vmem:[#allocation13 + $0x90] sm:$0xff]
        %v915 = vld [vmem:[#allocation13 + $0x98] sm:$0xff]
        %v916 = vld [vmem:[#allocation13 + $0xa0] sm:$0xff]
        %v917 = vld [vmem:[#allocation13 + $0xa8] sm:$0xff]
        %v918 = vld [vmem:[#allocation13 + $0xb0] sm:$0xff]
        %v919 = vld [vmem:[#allocation13 + $0xb8] sm:$0xff]
        %v920 = vld [vmem:[#allocation13 + $0xc0] sm:$0xff]
        %v921 = vld [vmem:[#allocation13 + $0xc8] sm:$0xff]
        %v922 = vld [vmem:[#allocation13 + $0xd0] sm:$0xff]
        %v923 = vld [vmem:[#allocation13 + $0xd8] sm:$0xff]
        %v924 = vld [vmem:[#allocation13 + $0xe0] sm:$0xff]
        %v925 = vld [vmem:[#allocation13 + $0xe8] sm:$0xff]
        %v926 = vld [vmem:[#allocation13 + $0xf0] sm:$0xff]
        %v927 = vld [vmem:[#allocation13 + $0xf8] sm:$0xff]
        %v928 = vld [vmem:[%s8] sm:$0x1]
        %v930 = vlaneseq
        %v931 = vshrl.u32 %v930, 7
        %v932 = vsub.s32 0, %v931
        %v933 = vrot.slane %v928, %v932
        %935 = vmatprep.subr.mxu0 0.0
        %936 = vmatpush1.msra.mxu0 %v896
        %937 = vmatprep.subr.mxu0 0.0
        %938 = vmatpush1.msra.mxu0 %v897
        %939 = vmatprep.subr.mxu0 0.0
        %940 = vmatpush1.msra.mxu0 %v898
        %941 = vmatprep.subr.mxu0 0.0
        %942 = vmatpush1.msra.mxu0 %v899
        %943 = vmatprep.subr.mxu0 0.0
        %944 = vmatpush1.msra.mxu0 %v900
        %945 = vmatprep.subr.mxu0 0.0
        %946 = vmatpush1.msra.mxu0 %v901
        %947 = vmatprep.subr.mxu0 0.0
        %948 = vmatpush1.msra.mxu0 %v902
        %949 = vmatprep.subr.mxu0 0.0
        %950 = vmatpush1.msra.mxu0 %v903
        %951 = vmatprep.subr.mxu0 0.0
        %952 = vmatpush1.msra.mxu0 %v904
        %953 = vmatprep.subr.mxu0 0.0
        %954 = vmatpush1.msra.mxu0 %v905
        %955 = vmatprep.subr.mxu0 0.0
        %956 = vmatpush1.msra.mxu0 %v906
        %957 = vmatprep.subr.mxu0 0.0
        %958 = vmatpush1.msra.mxu0 %v907
        %959 = vmatprep.subr.mxu0 0.0
        %960 = vmatpush1.msra.mxu0 %v908
        %961 = vmatprep.subr.mxu0 0.0
        %962 = vmatpush1.msra.mxu0 %v909
        %963 = vmatprep.subr.mxu0 0.0
        %964 = vmatpush1.msra.mxu0 %v910
        %965 = vmatprep.subr.mxu0 0.0
        %966 = vmatpush1.msra.mxu0 %v911
        %967 = vmatprep.subr.mxu0 0.0
        %968 = vmatpush1.msra.mxu0 %v912
        %969 = vmatprep.subr.mxu0 0.0
        %970 = vmatpush1.msra.mxu0 %v913
        %971 = vmatprep.subr.mxu0 0.0
        %972 = vmatpush1.msra.mxu0 %v914
        %973 = vmatprep.subr.mxu0 0.0
        %974 = vmatpush1.msra.mxu0 %v915
        %975 = vmatprep.subr.mxu0 0.0
        %976 = vmatpush1.msra.mxu0 %v916
        %977 = vmatprep.subr.mxu0 0.0
        %978 = vmatpush1.msra.mxu0 %v917
        %979 = vmatprep.subr.mxu0 0.0
        %980 = vmatpush1.msra.mxu0 %v918
        %981 = vmatprep.subr.mxu0 0.0
        %982 = vmatpush1.msra.mxu0 %v919
        %983 = vmatprep.subr.mxu0 0.0
        %984 = vmatpush1.msra.mxu0 %v920
        %985 = vmatprep.subr.mxu0 0.0
        %986 = vmatpush1.msra.mxu0 %v921
        %987 = vmatprep.subr.mxu0 0.0
        %988 = vmatpush1.msra.mxu0 %v922
        %989 = vmatprep.subr.mxu0 0.0
        %990 = vmatpush1.msra.mxu0 %v923
        %991 = vmatprep.subr.mxu0 0.0
        %992 = vmatpush1.msra.mxu0 %v924
        %993 = vmatprep.subr.mxu0 0.0
        %994 = vmatpush1.msra.mxu0 %v925
        %995 = vmatprep.subr.mxu0 0.0
        %996 = vmatpush1.msra.mxu0 %v926
        %997 = vmatprep.subr.mxu0 0.0
        %998 = vmatpush1.msra.mxu0 %v927
        %999 = vmatprep.mubr.f32.mxu0 %v893
        %1000 = vmatmul.mubr.f32.gmra.mrb[0].mxu0 %v892
        %v1001 = vpop.f32.mrb[0].mxu0
        %v1002 = vadd.f32 %v933, %v1001
        %v1003 = vpop.f32.mrb[0].mxu0
        %1004 = vmatprep.mubr.f32.mxu0 %v895
        %1005 = vmatmul.mubr.f32.gmra.mrb[0].mxu0 %v894
        %v1006 = vpop.f32.mrb[0].mxu0
        %v1007 = vadd.f32 %v933, %v1006
        %v1008 = vpop.f32.mrb[0].mxu0
        %1009 = vdwg.mxu0
        %v1010 = vmax.f32 %v1002, 0.0
        %v1011 = vmax.f32 %v1007, 0.0
        %s1012 = scalar_lea.vmem [#allocation4], 2
        %v1013 = vld [vmem:[%s1012] sm:$0x3]
        %1014 = vst [vmem:[#allocation2] sm:$0x3] %v1013
        %v1017 = vrot.slane %v1010, 6
        %v1018 = vrot.slane %v1011, 6
        %v1019 = vsel %vm882, %v1017, %v1018
        %1022 = vst [vmem:[#allocation2] sm:$0xfc] %v1017
        %1023 = vst [vmem:[#allocation2 + $0x10] sm:$0xff] %v1019
        %1024 = vst [vmem:[#allocation2 + $0x8] sm:$0xff] %v1010
        %1025 = vst [vmem:[#allocation2 + $0x18] sm:$0xff] %v1011
        %v1026 = vld [vmem:[#allocation2] sm:$0xff]
        %v1027 = vld [vmem:[#allocation2 + $0x8] sm:$0xff]
        %v1028 = vld [vmem:[#allocation2 + $0x10] sm:$0xff]
        %v1029 = vld [vmem:[#allocation2 + $0x18] sm:$0xff]
        %v1030 = vld [vmem:[#allocation14] sm:$0xff]
        %v1031 = vld [vmem:[#allocation14 + $0x8] sm:$0xff]
        %v1032 = vld [vmem:[#allocation14 + $0x10] sm:$0xff]
        %v1033 = vld [vmem:[#allocation14 + $0x18] sm:$0xff]
        %v1034 = vld [vmem:[#allocation14 + $0x20] sm:$0xff]
        %v1035 = vld [vmem:[#allocation14 + $0x28] sm:$0xff]
        %v1036 = vld [vmem:[#allocation14 + $0x30] sm:$0xff]
        %v1037 = vld [vmem:[#allocation14 + $0x38] sm:$0xff]
        %v1038 = vld [vmem:[#allocation14 + $0x40] sm:$0xff]
        %v1039 = vld [vmem:[#allocation14 + $0x48] sm:$0xff]
        %v1040 = vld [vmem:[#allocation14 + $0x50] sm:$0xff]
        %v1041 = vld [vmem:[#allocation14 + $0x58] sm:$0xff]
        %v1042 = vld [vmem:[#allocation14 + $0x60] sm:$0xff]
        %v1043 = vld [vmem:[#allocation14 + $0x68] sm:$0xff]
        %v1044 = vld [vmem:[#allocation14 + $0x70] sm:$0xff]
        %v1045 = vld [vmem:[#allocation14 + $0x78] sm:$0xff]
        %v1046 = vld [vmem:[#allocation14 + $0x80] sm:$0xff]
        %v1047 = vld [vmem:[#allocation14 + $0x88] sm:$0xff]
        %v1048 = vld [vmem:[#allocation14 + $0x90] sm:$0xff]
        %v1049 = vld [vmem:[#allocation14 + $0x98] sm:$0xff]
        %v1050 = vld [vmem:[#allocation14 + $0xa0] sm:$0xff]
        %v1051 = vld [vmem:[#allocation14 + $0xa8] sm:$0xff]
        %v1052 = vld [vmem:[#allocation14 + $0xb0] sm:$0xff]
        %v1053 = vld [vmem:[#allocation14 + $0xb8] sm:$0xff]
        %v1054 = vld [vmem:[#allocation14 + $0xc0] sm:$0xff]
        %v1055 = vld [vmem:[#allocation14 + $0xc8] sm:$0xff]
        %v1056 = vld [vmem:[#allocation14 + $0xd0] sm:$0xff]
        %v1057 = vld [vmem:[#allocation14 + $0xd8] sm:$0xff]
        %v1058 = vld [vmem:[#allocation14 + $0xe0] sm:$0xff]
        %v1059 = vld [vmem:[#allocation14 + $0xe8] sm:$0xff]
        %v1060 = vld [vmem:[#allocation14 + $0xf0] sm:$0xff]
        %v1061 = vld [vmem:[#allocation14 + $0xf8] sm:$0xff]
        %v1062 = vld [vmem:[%s10] sm:$0x1]
        %v1064 = vlaneseq
        %v1065 = vshrl.u32 %v1064, 7
        %v1066 = vsub.s32 0, %v1065
        %v1067 = vrot.slane %v1062, %v1066
        %1069 = vmatprep.subr.mxu0 0.0
        %1070 = vmatpush1.msra.mxu0 %v1030
        %1071 = vmatprep.subr.mxu0 0.0
        %1072 = vmatpush1.msra.mxu0 %v1031
        %1073 = vmatprep.subr.mxu0 0.0
        %1074 = vmatpush1.msra.mxu0 %v1032
        %1075 = vmatprep.subr.mxu0 0.0
        %1076 = vmatpush1.msra.mxu0 %v1033
        %1077 = vmatprep.subr.mxu0 0.0
        %1078 = vmatpush1.msra.mxu0 %v1034
        %1079 = vmatprep.subr.mxu0 0.0
        %1080 = vmatpush1.msra.mxu0 %v1035
        %1081 = vmatprep.subr.mxu0 0.0
        %1082 = vmatpush1.msra.mxu0 %v1036
        %1083 = vmatprep.subr.mxu0 0.0
        %1084 = vmatpush1.msra.mxu0 %v1037
        %1085 = vmatprep.subr.mxu0 0.0
        %1086 = vmatpush1.msra.mxu0 %v1038
        %1087 = vmatprep.subr.mxu0 0.0
        %1088 = vmatpush1.msra.mxu0 %v1039
        %1089 = vmatprep.subr.mxu0 0.0
        %1090 = vmatpush1.msra.mxu0 %v1040
        %1091 = vmatprep.subr.mxu0 0.0
        %1092 = vmatpush1.msra.mxu0 %v1041
        %1093 = vmatprep.subr.mxu0 0.0
        %1094 = vmatpush1.msra.mxu0 %v1042
        %1095 = vmatprep.subr.mxu0 0.0
        %1096 = vmatpush1.msra.mxu0 %v1043
        %1097 = vmatprep.subr.mxu0 0.0
        %1098 = vmatpush1.msra.mxu0 %v1044
        %1099 = vmatprep.subr.mxu0 0.0
        %1100 = vmatpush1.msra.mxu0 %v1045
        %1101 = vmatprep.subr.mxu0 0.0
        %1102 = vmatpush1.msra.mxu0 %v1046
        %1103 = vmatprep.subr.mxu0 0.0
        %1104 = vmatpush1.msra.mxu0 %v1047
        %1105 = vmatprep.subr.mxu0 0.0
        %1106 = vmatpush1.msra.mxu0 %v1048
        %1107 = vmatprep.subr.mxu0 0.0
        %1108 = vmatpush1.msra.mxu0 %v1049
        %1109 = vmatprep.subr.mxu0 0.0
        %1110 = vmatpush1.msra.mxu0 %v1050
        %1111 = vmatprep.subr.mxu0 0.0
        %1112 = vmatpush1.msra.mxu0 %v1051
        %1113 = vmatprep.subr.mxu0 0.0
        %1114 = vmatpush1.msra.mxu0 %v1052
        %1115 = vmatprep.subr.mxu0 0.0
        %1116 = vmatpush1.msra.mxu0 %v1053
        %1117 = vmatprep.subr.mxu0 0.0
        %1118 = vmatpush1.msra.mxu0 %v1054
        %1119 = vmatprep.subr.mxu0 0.0
        %1120 = vmatpush1.msra.mxu0 %v1055
        %1121 = vmatprep.subr.mxu0 0.0
        %1122 = vmatpush1.msra.mxu0 %v1056
        %1123 = vmatprep.subr.mxu0 0.0
        %1124 = vmatpush1.msra.mxu0 %v1057
        %1125 = vmatprep.subr.mxu0 0.0
        %1126 = vmatpush1.msra.mxu0 %v1058
        %1127 = vmatprep.subr.mxu0 0.0
        %1128 = vmatpush1.msra.mxu0 %v1059
        %1129 = vmatprep.subr.mxu0 0.0
        %1130 = vmatpush1.msra.mxu0 %v1060
        %1131 = vmatprep.subr.mxu0 0.0
        %1132 = vmatpush1.msra.mxu0 %v1061
        %1133 = vmatprep.mubr.f32.mxu0 %v1027
        %1134 = vmatmul.mubr.f32.gmra.mrb[0].mxu0 %v1026
        %v1135 = vpop.f32.mrb[0].mxu0
        %v1136 = vadd.f32 %v1067, %v1135
        %v1137 = vpop.f32.mrb[0].mxu0
        %1138 = vmatprep.mubr.f32.mxu0 %v1029
        %1139 = vmatmul.mubr.f32.gmra.mrb[0].mxu0 %v1028
        %v1140 = vpop.f32.mrb[0].mxu0
        %v1141 = vadd.f32 %v1067, %v1140
        %v1142 = vpop.f32.mrb[0].mxu0
        %1143 = vdwg.mxu0
        %v1144 = vmax.f32 %v1136, 0.0
        %v1145 = vmax.f32 %v1141, 0.0
        %v1146 = vadd.f32 %v1144, %v875
        %v1147 = vadd.f32 %v1145, %v876
        %v1148 = vmax.f32 %v1146, 0.0
        %v1149 = vmax.f32 %v1147, 0.0
        %1150 = vst [vmem:[%s495] sm:$0xff] %v1148
        %1151 = vst [vmem:[%s495 + $0x8] sm:$0xff] %v1149
        %s1152 = sand.u32 %s291, 1
        %s1153 = scalar_lea.sflag [#allocation7], %s1152
        %s1154 = sand.u32 %s291, 1
        %s1155 = smul.addr %s1154, 16
        %s1156 = scalar_lea.vmem [#allocation16], %s1155
        // Predicated region
        $region93: #{tpu_custom_call.1} parent=63 // pred_check
          %p1157 = pneg %p301
        $region94: #{tpu_custom_call.1} parent=63 // pred_check_branch
          %1159 = sbr.rel (%p1157) target = $region96
        $region95: #{tpu_custom_call.1} parent=63 // pred_region
          %s1160 = smul.u32 2, %s36
          %s1162 = ssub.s32 256, 256
          %1163 = vsyncadd %s1153, %s1162
          %s1164 = smul.addr %s35, 2
          %s1165 = sadd.s32 %s1160, %s1164
          %s1166 = smul.addr %s1165, 128
          %s1167 = scalar_lea.hbm %s11, %s1166
          %s1168 = sshll.u32 %s1156, 4
          %s1169 = int_to_ptr.vmem [resolvable:$true] %s1168
          %1174 = dma.vmem_to_hbm [thread:$0]  %s1169, 256, %s1167, %s1153, 128, 128, 8
        $region96: #{tpu_custom_call.1} parent=63 // pred_fallthru
          _
      $region64: #{tpu_custom_call.1} parent=5 // pred_fallthru
        _
      %p1175 = scmp.le.s32.totalorder 2, %s26
      // Predicated region
      $region97: #{tpu_custom_call.1} parent=5 // pred_check
        %p1176 = pneg %p1175
      $region98: #{tpu_custom_call.1} parent=5 // pred_check_branch
        %1178 = sbr.rel (%p1176) target = $region100
      $region99: #{tpu_custom_call.1} parent=5 // pred_region
        %s1179 = ssub.s32 %s26, 2
        // Predicated region
        $region101: #{tpu_custom_call.1} parent=99 // pred_check
          %p1180 = pneg %p307
        $region102: #{tpu_custom_call.1} parent=99 // pred_check_branch
          %1182 = sbr.rel (%p1180) target = $region104
        $region103: #{tpu_custom_call.1} parent=99 // pred_region
          %s1183 = sand.u32 %s292, 1
          %s1184 = scalar_lea.sflag [#allocation7], %s1183
          %s1185 = sand.u32 %s292, 1
          %s1186 = smul.addr %s1185, 16
          %s1187 = scalar_lea.vmem [#allocation16], %s1186
          %1188 = dma.done %s1184, 256
        $region104: #{tpu_custom_call.1} parent=99 // pred_fallthru
          _
      $region100: #{tpu_custom_call.1} parent=5 // pred_fallthru
        _
    $region6: #{tpu_custom_call.1} parent=1 // loop_footer
      %s30 = sadd.s32 1, %s26
    $region7: #{tpu_custom_call.1} parent=1 // loop_footer_branch
      %25 = sbr.rel target = $region3
    $region8: #{tpu_custom_call.1} parent=1 // loop_exit
      _
    %1189 = vsyncpa [#allocation6], 1
    %s1190 = scalar_lea.sflag [#allocation6], 1
    %1191 = vsyncpa %s1190, 1
    %1192 = vsyncpa [#allocation9], 1
    %1193 = vsyncpa [#allocation12], 1
    %1194 = vsyncpa [#allocation15], 1
    %1195 = vsyncpa [#allocation7], 1
    %s1196 = scalar_lea.sflag [#allocation7], 1
    %1197 = vsyncpa %s1196, 1

</llo_original>
